<compile_context>
chip_gen: v7x
topology: tpu7x:2x2x1
jax: 0.10.0
libtpu: 0.0.40
codegen_flags: <defaults>
</compile_context>

<pallas_src>
import math

import jax
import jax.numpy as jnp
from jax.experimental import pallas as pl
from jax.experimental.pallas import tpu as pltpu

GUMBEL_TAU = 0.5   # args.gumbeltau
EPS = 1e-7


def _sigmoid(z):
    return 1.0 / (1.0 + jnp.exp(-z))


def sage_kernel(xT_ref, uT_ref, gd_ref, b_ref,
                w1t_ref, b1t_ref, w2t_ref, b2t_ref, w3d_ref, b3d_ref,
                feat_ref, assign_ref):
    F = xT_ref.shape[1]
    M = xT_ref.shape[2]
    GB = b_ref.shape[1]
    n = float(M // GB)                      # nodes per graph (static)

    xT = xT_ref[0]                          # (F, M)  features on sublanes, nodes on lanes
    uT = uT_ref[0]                          # (F, M)  uniform[0,1) noise (torch.rand_like)
    gdT = gd_ref[0]                         # (1, M)  gumbel0 - gumbel1 ~ Logistic(0,1)
    B = b_ref[...]                          # (M, GB) node -> graph selector (0/1 f32)

    # ---- assignment MLP, fully lane-dense (nodes on the 128-lane axis) --------
    h1 = jnp.tanh(jnp.dot(w1t_ref[...], xT,
                          preferred_element_type=jnp.float32) + b1t_ref[...])   # (H1, M)
    h2 = jnp.tanh(jnp.dot(w2t_ref[...], h1,
                          preferred_element_type=jnp.float32) + b2t_ref[...])   # (H2, M)
    # softmax([z0, z1])[0] == sigmoid(z0 - z1): only the fc3 column difference is
    # needed; compute it on the VPU/XLU (sublane reduce) instead of a 1-col MXU op.
    d = jnp.sum(h2 * w3d_ref[...], axis=0, keepdims=True) + b3d_ref[...]        # (1, M)
    a0 = _sigmoid(d)                                        # assignment[:, 0]
    # soft gumbel-softmax of the 2 probabilities (tau) == sigmoid of the perturbed
    # probability difference ((a0 - a1) + (g0 - g1)) / tau, with a1 = 1 - a0.
    lam = _sigmoid(((2.0 * a0 - 1.0) + gdT) / GUMBEL_TAU)                        # (1, M)
    lam2 = lam * lam
    oml = 1.0 - lam

    # ---- per-graph segmented node sums as MXU matmuls against the selector ----
    x2T = xT * xT
    sum_x = jnp.dot(xT, B, preferred_element_type=jnp.float32)        # (F, GB) sum_n x
    sum_x2 = jnp.dot(x2T, B, preferred_element_type=jnp.float32)      # (F, GB) sum_n x^2
    sub_rep = jnp.dot(xT * lam, B, preferred_element_type=jnp.float32)    # sum_n lam*x
    s4 = jnp.dot(uT * oml, B, preferred_element_type=jnp.float32)         # sum_n u*(1-lam)
    a2 = jnp.dot(xT * lam2, B, preferred_element_type=jnp.float32)        # sum_n lam^2*x
    a1 = jnp.dot(x2T * lam2, B, preferred_element_type=jnp.float32)       # sum_n lam^2*x^2
    s0 = jnp.dot(lam, B, preferred_element_type=jnp.float32)          # (1, GB) sum_n lam
    a3 = jnp.dot(lam2, B, preferred_element_type=jnp.float32)         # (1, GB) sum_n lam^2
    s2 = n - 2.0 * s0 + a3                                             # sum_n (1-lam)^2

    # torch.std_mean(x, dim=0): per-graph, per-feature mean and unbiased std.
    mean = sum_x / n                                                   # (F, GB)
    var = jnp.maximum(sum_x2 - mean * sum_x, 0.0) / (n - 1.0)
    std = jnp.sqrt(var)
    inv_std = 1.0 / (std + EPS)

    graph_feat = sum_x                                                 # sum_n x
    # sum_n [lam*x + (1-lam)*mean + u*(1-lam)*std]
    noisy_graph = sub_rep + mean * (n - s0) + std * s4

    # KL = mean_{n,f}[0.5*(1-lam)^2*(std/(std+eps))^2]
    #    + mean_f[ sum_n (lam*(x - mean)/(std+eps))^2 ]
    r2 = (std * inv_std) ** 2
    s3 = a1 - 2.0 * mean * a2 + mean * mean * a3          # sum_n lam^2 (x-mean)^2
    term1 = 0.5 * (s2 / n) * jnp.mean(r2, axis=0, keepdims=True)       # (1, GB)
    term2 = jnp.mean(s3 * (inv_std * inv_std), axis=0, keepdims=True)  # (1, GB)
    kl = term1 + term2                                                 # (1, GB)

    # Packed per-graph slab: rows [graph | noisy_graph | subgraph | kl], graphs on
    # lanes.  Each store below is sublane-aligned and full-lane (no lane masking).
    feat_ref[0, 0 * F:1 * F, :] = graph_feat
    feat_ref[0, 1 * F:2 * F, :] = noisy_graph
    feat_ref[0, 2 * F:3 * F, :] = sub_rep
    feat_ref[0, 3 * F:3 * F + 1, :] = kl

    assign_ref[0] = a0                                                 # lane-dense (1, M)


def subgraph_forward(x, params, key, graphs_per_block=None):
    """Pallas equivalent of Subgraph.forward over a stack of same-size graphs (G, N, F)."""
    G, N, F = x.shape
    w1, b1, w2, b2, w3, b3 = params
    H1, H2, H3 = w1.shape[1], w2.shape[1], w3.shape[1]
    assert H3 == 2, "SAGE assignment head must have 2 classes (subgraph / noise)"

    # Transposed (feature-major) weights; fc3 collapsed to its column difference.
    w1t = jnp.asarray(w1, jnp.float32).T                  # (H1, F)
    b1t = jnp.asarray(b1, jnp.float32).reshape(1, H1).T   # (H1, 1)
    w2t = jnp.asarray(w2, jnp.float32).T                  # (H2, H1)
    b2t = jnp.asarray(b2, jnp.float32).reshape(1, H2).T   # (H2, 1)
    w3d = jnp.asarray(w3, jnp.float32)[:, 0:1] - jnp.asarray(w3, jnp.float32)[:, 1:2]
    b3r = jnp.asarray(b3, jnp.float32).reshape(1, 2)
    b3d = b3r[:, 0:1] - b3r[:, 1:2]                       # (1, 1)

    # Graphs per block: target ~1024 nodes per grid step, keep >=2 steps when the
    # graph count allows (v7x megacore), sublane-align GB and lane-align M = GB*N.
    if graphs_per_block is None:
        gb = max(1, 1024 // max(N, 1))
        gb = min(gb, max(1, -(-G // 2)))          # keep >= 2 grid steps when possible
        gb = max(8, -(-gb // 8) * 8)              # sublane-friendly graph count
        q = 128 // math.gcd(128, N)               # make GB*N a multiple of 128
        align = (8 * q) // math.gcd(8, q)
        gb = -(-gb // align) * align
        graphs_per_block = gb
    GB = graphs_per_block
    Gp = -(-G // GB) * GB
    nb = Gp // GB
    M = GB * N

    xp = x.astype(jnp.float32)
    if Gp != G:
        # all-zero pad graphs are numerically safe (kl = 0) and sliced off below.
        xp = jnp.concatenate([xp, jnp.zeros((Gp - G, N, F), jnp.float32)], axis=0)

    # Feature-major node blocks: (nb, F, M), nodes of GB graphs on the lane axis.
    xT = xp.reshape(nb, GB * N, F).transpose(0, 2, 1)

    ku, kg = jax.random.split(key)
    uT = jax.random.uniform(ku, (nb, F, M), dtype=jnp.float32)        # torch.rand_like
    # gumbel0 - gumbel1 ~ Logistic(0,1): one draw instead of two Gumbels.
    gd = jax.random.logistic(kg, (nb, 1, M), dtype=jnp.float32)

    # Node -> graph block selector (identical for every block): segmented per-graph
    # node sums in the kernel become matmuls against it.
    node_graph = jnp.arange(M, dtype=jnp.int32) // N
    bmat = (node_graph[:, None] ==
            jnp.arange(GB, dtype=jnp.int32)[None, :]).astype(jnp.float32)   # (M, GB)

    R = 3 * F + 1
    blk3 = lambda g: (g, 0, 0)
    full = lambda g: (0, 0)

    feat, assign = pl.pallas_call(
        sage_kernel,
        grid=(nb,),
        in_specs=[
            pl.BlockSpec((1, F, M), blk3),    # xT
            pl.BlockSpec((1, F, M), blk3),    # uniform noise
            pl.BlockSpec((1, 1, M), blk3),    # logistic (gumbel-difference) noise
            pl.BlockSpec((M, GB), full),      # node -> graph selector
            pl.BlockSpec((H1, F), full),      # fc1 W^T
            pl.BlockSpec((H1, 1), full),      # fc1 b
            pl.BlockSpec((H2, H1), full),     # fc2 W^T
            pl.BlockSpec((H2, 1), full),      # fc2 b
            pl.BlockSpec((H2, 1), full),      # fc3 W column difference
            pl.BlockSpec((1, 1), full),       # fc3 b column difference
        ],
        out_specs=[
            pl.BlockSpec((1, R, GB), blk3),   # packed per-graph slab
            pl.BlockSpec((1, 1, M), blk3),    # assignment[:, 0] per node (lane-dense)
        ],
        out_shape=(
            jax.ShapeDtypeStruct((nb, R, GB), jnp.float32),
            jax.ShapeDtypeStruct((nb, 1, M), jnp.float32),
        ),
        compiler_params=pltpu.CompilerParams(
            dimension_semantics=("parallel",)),
    )(xT, uT, gd, bmat, w1t, b1t, w2t, b2t, w3d, b3d)

    feat = feat.transpose(0, 2, 1).reshape(Gp, R)[:G]
    assign = assign.reshape(Gp, N)[:G]

    embeddings = feat[:, 0 * F:1 * F]          # per-graph graph_feature
    positive = feat[:, 1 * F:2 * F]            # per-graph noisy_graph_feature
    _subgraph_rep = feat[:, 2 * F:3 * F]       # computed by SAGE, not returned (as in torch)
    kl_per_graph = feat[:, 3 * F]
    KL_Loss = jnp.mean(kl_per_graph)

    preserved_nodes = assign > 0.5             # (G, N) bool matrix (one row per graph)
    noisy_nodes = ~preserved_nodes
    preserve_rate = jnp.mean(preserved_nodes.astype(jnp.float32))
    # TODO(synk): the torch module returns python lists of per-graph bool tensors and
    # calls torch.cuda.empty_cache() / .clone().detach(); here the per-graph masks are
    # returned as stacked (G, N) matrices and the CUDA-specific calls are no-ops.
    return (embeddings, positive, KL_Loss, preserve_rate,
            preserved_nodes, noisy_nodes)


def _linear_init(key, fan_in, fan_out):
    kw, kb = jax.random.split(key)
    bound = float(fan_in) ** -0.5
    w = jax.random.uniform(kw, (fan_in, fan_out), minval=-bound, maxval=bound,
                           dtype=jnp.float32)
    b = jax.random.uniform(kb, (1, fan_out), minval=-bound, maxval=bound,
                           dtype=jnp.float32)
    return w, b


if __name__ == "__main__":
    key = jax.random.PRNGKey(0)
    G, N, F = 32, 8, 32            # num graphs, nodes per graph, dim_e
    H1, H2, H3 = 16, 8, 2          # first/second/third_dense_neurons

    kx, kp, kr = jax.random.split(key, 3)
    x = jax.random.normal(kx, (G, N, F), dtype=jnp.float32)

    k1, k2, k3 = jax.random.split(kp, 3)
    w1, b1 = _linear_init(k1, F, H1)
    w2, b2 = _linear_init(k2, H1, H2)
    w3, b3 = _linear_init(k3, H2, H3)

    outs = subgraph_forward(x, (w1, b1, w2, b2, w3, b3), kr)
    embeddings, positive, KL_Loss, preserve_rate, preserved, noisy = outs
    jax.block_until_ready((embeddings, positive, KL_Loss, preserve_rate,
                           preserved, noisy))

    assert embeddings.shape == (G, F)
    assert positive.shape == (G, F)
    assert preserved.shape == (G, N) and preserved.dtype == jnp.bool_
    assert noisy.shape == (G, N)
    assert bool(jnp.isfinite(KL_Loss))
    assert 0.0 <= float(preserve_rate) <= 1.0
    print("KERNEL_OK")
</pallas_src>

<mosaic_0001>
module attributes {stable_mosaic.version = 11 : i64} {
  func.func @sage_kernel(%arg0: i32, %arg1: memref<1x32x128xf32, #tpu.memory_space<vmem>>, %arg2: memref<1x32x128xf32, #tpu.memory_space<vmem>>, %arg3: memref<1x1x128xf32, #tpu.memory_space<vmem>>, %arg4: memref<128x16xf32, #tpu.memory_space<vmem>>, %arg5: memref<16x32xf32, #tpu.memory_space<vmem>>, %arg6: memref<16x1xf32, #tpu.memory_space<vmem>>, %arg7: memref<8x16xf32, #tpu.memory_space<vmem>>, %arg8: memref<8x1xf32, #tpu.memory_space<vmem>>, %arg9: memref<8x1xf32, #tpu.memory_space<vmem>>, %arg10: memref<1x1xf32, #tpu.memory_space<vmem>>, %arg11: memref<1x97x16xf32, #tpu.memory_space<vmem>>, %arg12: memref<1x1x128xf32, #tpu.memory_space<vmem>>) attributes {dimension_semantics = [#tpu.dimension_semantics<parallel>], iteration_bounds = array<i64: 2>, scalar_prefetch = 0 : i64, scratch_operands = 0 : i64, tpu.core_type = #tpu.core_type<tc>, window_params = [{transform_indices = @transform_0, window_bounds = array<i64: 1, 32, 128>}, {transform_indices = @transform_1, window_bounds = array<i64: 1, 32, 128>}, {transform_indices = @transform_2, window_bounds = array<i64: 1, 1, 128>}, {pipeline_mode = #tpu.pipeline_mode<synchronous>, transform_indices = @transform_3, window_bounds = array<i64: 128, 16>}, {pipeline_mode = #tpu.pipeline_mode<synchronous>, transform_indices = @transform_4, window_bounds = array<i64: 16, 32>}, {pipeline_mode = #tpu.pipeline_mode<synchronous>, transform_indices = @transform_5, window_bounds = array<i64: 16, 1>}, {pipeline_mode = #tpu.pipeline_mode<synchronous>, transform_indices = @transform_6, window_bounds = array<i64: 8, 16>}, {pipeline_mode = #tpu.pipeline_mode<synchronous>, transform_indices = @transform_7, window_bounds = array<i64: 8, 1>}, {pipeline_mode = #tpu.pipeline_mode<synchronous>, transform_indices = @transform_8, window_bounds = array<i64: 8, 1>}, {pipeline_mode = #tpu.pipeline_mode<synchronous>, transform_indices = @transform_9, window_bounds = array<i64: 1, 1>}, {transform_indices = @transform_10, window_bounds = array<i64: 1, 97, 16>}, {transform_indices = @transform_11, window_bounds = array<i64: 1, 1, 128>}]} {
    %c0 = arith.constant 0 : index
    %c0_0 = arith.constant 0 : index
    %c0_1 = arith.constant 0 : index
    %0 = vector.load %arg1[%c0, %c0_0, %c0_1] : memref<1x32x128xf32, #tpu.memory_space<vmem>>, vector<1x32x128xf32>
    %1 = vector.shape_cast %0 : vector<1x32x128xf32> to vector<32x128xf32>
    %c0_2 = arith.constant 0 : index
    %c0_3 = arith.constant 0 : index
    %c0_4 = arith.constant 0 : index
    %2 = vector.load %arg2[%c0_2, %c0_3, %c0_4] : memref<1x32x128xf32, #tpu.memory_space<vmem>>, vector<1x32x128xf32>
    %3 = vector.shape_cast %2 : vector<1x32x128xf32> to vector<32x128xf32>
    %c0_5 = arith.constant 0 : index
    %c0_6 = arith.constant 0 : index
    %c0_7 = arith.constant 0 : index
    %4 = vector.load %arg3[%c0_5, %c0_6, %c0_7] : memref<1x1x128xf32, #tpu.memory_space<vmem>>, vector<1x1x128xf32>
    %5 = vector.shape_cast %4 : vector<1x1x128xf32> to vector<1x128xf32>
    %c0_8 = arith.constant 0 : index
    %c0_9 = arith.constant 0 : index
    %6 = vector.load %arg4[%c0_8, %c0_9] : memref<128x16xf32, #tpu.memory_space<vmem>>, vector<128x16xf32>
    %c0_10 = arith.constant 0 : index
    %c0_11 = arith.constant 0 : index
    %7 = vector.load %arg5[%c0_10, %c0_11] : memref<16x32xf32, #tpu.memory_space<vmem>>, vector<16x32xf32>
    %cst = arith.constant dense<0.000000e+00> : vector<16x128xf32>
    %8 = tpu.matmul %7, %1, %cst {dimension_numbers = #tpu.dot_dimension_numbers<[1], [0], [0], [1], [0, 0, 1, 1], [], []>} : vector<16x32xf32>, vector<32x128xf32>, vector<16x128xf32> -> vector<16x128xf32>
    %c0_12 = arith.constant 0 : index
    %c0_13 = arith.constant 0 : index
    %9 = vector.load %arg6[%c0_12, %c0_13] : memref<16x1xf32, #tpu.memory_space<vmem>>, vector<16x1xf32>
    %10 = vector.broadcast %9 : vector<16x1xf32> to vector<16x128xf32>
    %11 = arith.addf %8, %10 : vector<16x128xf32>
    %12 = math.tanh %11 : vector<16x128xf32>
    %c0_14 = arith.constant 0 : index
    %c0_15 = arith.constant 0 : index
    %13 = vector.load %arg7[%c0_14, %c0_15] : memref<8x16xf32, #tpu.memory_space<vmem>>, vector<8x16xf32>
    %cst_16 = arith.constant dense<0.000000e+00> : vector<8x128xf32>
    %14 = tpu.matmul %13, %12, %cst_16 {dimension_numbers = #tpu.dot_dimension_numbers<[1], [0], [0], [1], [0, 0, 1, 1], [], []>} : vector<8x16xf32>, vector<16x128xf32>, vector<8x128xf32> -> vector<8x128xf32>
    %c0_17 = arith.constant 0 : index
    %c0_18 = arith.constant 0 : index
    %15 = vector.load %arg8[%c0_17, %c0_18] : memref<8x1xf32, #tpu.memory_space<vmem>>, vector<8x1xf32>
    %16 = vector.broadcast %15 : vector<8x1xf32> to vector<8x128xf32>
    %17 = arith.addf %14, %16 : vector<8x128xf32>
    %18 = math.tanh %17 : vector<8x128xf32>
    %c0_19 = arith.constant 0 : index
    %c0_20 = arith.constant 0 : index
    %19 = vector.load %arg9[%c0_19, %c0_20] : memref<8x1xf32, #tpu.memory_space<vmem>>, vector<8x1xf32>
    %20 = vector.broadcast %19 : vector<8x1xf32> to vector<8x128xf32>
    %21 = arith.mulf %18, %20 : vector<8x128xf32>
    %cst_21 = arith.constant dense<0.000000e+00> : vector<128xf32>
    %22 = vector.multi_reduction <add>, %21, %cst_21 [0] : vector<8x128xf32> to vector<128xf32>
    %23 = vector.shape_cast %22 : vector<128xf32> to vector<1x128xf32>
    %c0_22 = arith.constant 0 : index
    %c0_23 = arith.constant 0 : index
    %24 = vector.load %arg10[%c0_22, %c0_23] : memref<1x1xf32, #tpu.memory_space<vmem>>, vector<1x1xf32>
    %25 = vector.broadcast %24 : vector<1x1xf32> to vector<1x128xf32>
    %26 = arith.addf %23, %25 : vector<1x128xf32>
    %cst_24 = arith.constant 0.000000e+00 : f32
    %27 = vector.broadcast %cst_24 : f32 to vector<1x128xf32>
    %28 = arith.subf %27, %26 : vector<1x128xf32>
    %29 = math.exp %28 : vector<1x128xf32>
    %cst_25 = arith.constant 1.000000e+00 : f32
    %30 = vector.broadcast %cst_25 : f32 to vector<1x128xf32>
    %31 = arith.addf %30, %29 : vector<1x128xf32>
    %cst_26 = arith.constant 1.000000e+00 : f32
    %32 = vector.broadcast %cst_26 : f32 to vector<1x128xf32>
    %33 = arith.divf %32, %31 : vector<1x128xf32>
    %cst_27 = arith.constant 2.000000e+00 : f32
    %34 = vector.broadcast %cst_27 : f32 to vector<1x128xf32>
    %35 = arith.mulf %34, %33 : vector<1x128xf32>
    %cst_28 = arith.constant 1.000000e+00 : f32
    %36 = vector.broadcast %cst_28 : f32 to vector<1x128xf32>
    %37 = arith.subf %35, %36 : vector<1x128xf32>
    %38 = arith.addf %37, %5 : vector<1x128xf32>
    %cst_29 = arith.constant 5.000000e-01 : f32
    %39 = vector.broadcast %cst_29 : f32 to vector<1x128xf32>
    %40 = arith.divf %38, %39 : vector<1x128xf32>
    %cst_30 = arith.constant 0.000000e+00 : f32
    %41 = vector.broadcast %cst_30 : f32 to vector<1x128xf32>
    %42 = arith.subf %41, %40 : vector<1x128xf32>
    %43 = math.exp %42 : vector<1x128xf32>
    %cst_31 = arith.constant 1.000000e+00 : f32
    %44 = vector.broadcast %cst_31 : f32 to vector<1x128xf32>
    %45 = arith.addf %44, %43 : vector<1x128xf32>
    %cst_32 = arith.constant 1.000000e+00 : f32
    %46 = vector.broadcast %cst_32 : f32 to vector<1x128xf32>
    %47 = arith.divf %46, %45 : vector<1x128xf32>
    %48 = arith.mulf %47, %47 : vector<1x128xf32>
    %cst_33 = arith.constant 1.000000e+00 : f32
    %49 = vector.broadcast %cst_33 : f32 to vector<1x128xf32>
    %50 = arith.subf %49, %47 : vector<1x128xf32>
    %51 = arith.mulf %1, %1 : vector<32x128xf32>
    %cst_34 = arith.constant dense<0.000000e+00> : vector<32x16xf32>
    %52 = tpu.matmul %1, %6, %cst_34 {dimension_numbers = #tpu.dot_dimension_numbers<[1], [0], [0], [1], [0, 0, 1, 1], [], []>} : vector<32x128xf32>, vector<128x16xf32>, vector<32x16xf32> -> vector<32x16xf32>
    %cst_35 = arith.constant dense<0.000000e+00> : vector<32x16xf32>
    %53 = tpu.matmul %51, %6, %cst_35 {dimension_numbers = #tpu.dot_dimension_numbers<[1], [0], [0], [1], [0, 0, 1, 1], [], []>} : vector<32x128xf32>, vector<128x16xf32>, vector<32x16xf32> -> vector<32x16xf32>
    %54 = vector.broadcast %47 : vector<1x128xf32> to vector<32x128xf32>
    %55 = arith.mulf %1, %54 : vector<32x128xf32>
    %cst_36 = arith.constant dense<0.000000e+00> : vector<32x16xf32>
    %56 = tpu.matmul %55, %6, %cst_36 {dimension_numbers = #tpu.dot_dimension_numbers<[1], [0], [0], [1], [0, 0, 1, 1], [], []>} : vector<32x128xf32>, vector<128x16xf32>, vector<32x16xf32> -> vector<32x16xf32>
    %57 = vector.broadcast %50 : vector<1x128xf32> to vector<32x128xf32>
    %58 = arith.mulf %3, %57 : vector<32x128xf32>
    %cst_37 = arith.constant dense<0.000000e+00> : vector<32x16xf32>
    %59 = tpu.matmul %58, %6, %cst_37 {dimension_numbers = #tpu.dot_dimension_numbers<[1], [0], [0], [1], [0, 0, 1, 1], [], []>} : vector<32x128xf32>, vector<128x16xf32>, vector<32x16xf32> -> vector<32x16xf32>
    %60 = vector.broadcast %48 : vector<1x128xf32> to vector<32x128xf32>
    %61 = arith.mulf %1, %60 : vector<32x128xf32>
    %cst_38 = arith.constant dense<0.000000e+00> : vector<32x16xf32>
    %62 = tpu.matmul %61, %6, %cst_38 {dimension_numbers = #tpu.dot_dimension_numbers<[1], [0], [0], [1], [0, 0, 1, 1], [], []>} : vector<32x128xf32>, vector<128x16xf32>, vector<32x16xf32> -> vector<32x16xf32>
    %63 = vector.broadcast %48 : vector<1x128xf32> to vector<32x128xf32>
    %64 = arith.mulf %51, %63 : vector<32x128xf32>
    %cst_39 = arith.constant dense<0.000000e+00> : vector<32x16xf32>
    %65 = tpu.matmul %64, %6, %cst_39 {dimension_numbers = #tpu.dot_dimension_numbers<[1], [0], [0], [1], [0, 0, 1, 1], [], []>} : vector<32x128xf32>, vector<128x16xf32>, vector<32x16xf32> -> vector<32x16xf32>
    %cst_40 = arith.constant dense<0.000000e+00> : vector<1x16xf32>
    %66 = tpu.matmul %47, %6, %cst_40 {dimension_numbers = #tpu.dot_dimension_numbers<[1], [0], [0], [1], [0, 0, 1, 1], [], []>} : vector<1x128xf32>, vector<128x16xf32>, vector<1x16xf32> -> vector<1x16xf32>
    %cst_41 = arith.constant dense<0.000000e+00> : vector<1x16xf32>
    %67 = tpu.matmul %48, %6, %cst_41 {dimension_numbers = #tpu.dot_dimension_numbers<[1], [0], [0], [1], [0, 0, 1, 1], [], []>} : vector<1x128xf32>, vector<128x16xf32>, vector<1x16xf32> -> vector<1x16xf32>
    %cst_42 = arith.constant 2.000000e+00 : f32
    %68 = vector.broadcast %cst_42 : f32 to vector<1x16xf32>
    %69 = arith.mulf %68, %66 : vector<1x16xf32>
    %cst_43 = arith.constant 8.000000e+00 : f32
    %70 = vector.broadcast %cst_43 : f32 to vector<1x16xf32>
    %71 = arith.subf %70, %69 : vector<1x16xf32>
    %72 = arith.addf %71, %67 : vector<1x16xf32>
    %cst_44 = arith.constant 8.000000e+00 : f32
    %73 = vector.broadcast %cst_44 : f32 to vector<32x16xf32>
    %74 = arith.divf %52, %73 : vector<32x16xf32>
    %75 = arith.mulf %74, %52 : vector<32x16xf32>
    %76 = arith.subf %53, %75 : vector<32x16xf32>
    %cst_45 = arith.constant 0.000000e+00 : f32
    %77 = vector.broadcast %cst_45 : f32 to vector<32x16xf32>
    %78 = arith.maximumf %76, %77 : vector<32x16xf32>
    %cst_46 = arith.constant 7.000000e+00 : f32
    %79 = vector.broadcast %cst_46 : f32 to vector<32x16xf32>
    %80 = arith.divf %78, %79 : vector<32x16xf32>
    %81 = math.sqrt %80 : vector<32x16xf32>
    %cst_47 = arith.constant 1.000000e-07 : f32
    %82 = vector.broadcast %cst_47 : f32 to vector<32x16xf32>
    %83 = arith.addf %81, %82 : vector<32x16xf32>
    %cst_48 = arith.constant 1.000000e+00 : f32
    %84 = vector.broadcast %cst_48 : f32 to vector<32x16xf32>
    %85 = arith.divf %84, %83 : vector<32x16xf32>
    %cst_49 = arith.constant 8.000000e+00 : f32
    %86 = vector.broadcast %cst_49 : f32 to vector<1x16xf32>
    %87 = arith.subf %86, %66 : vector<1x16xf32>
    %88 = vector.broadcast %87 : vector<1x16xf32> to vector<32x16xf32>
    %89 = arith.mulf %74, %88 : vector<32x16xf32>
    %90 = arith.addf %56, %89 : vector<32x16xf32>
    %91 = arith.mulf %81, %59 : vector<32x16xf32>
    %92 = arith.addf %90, %91 : vector<32x16xf32>
    %93 = arith.mulf %81, %85 : vector<32x16xf32>
    %94 = arith.mulf %93, %93 : vector<32x16xf32>
    %cst_50 = arith.constant 2.000000e+00 : f32
    %95 = vector.broadcast %cst_50 : f32 to vector<32x16xf32>
    %96 = arith.mulf %95, %74 : vector<32x16xf32>
    %97 = arith.mulf %96, %62 : vector<32x16xf32>
    %98 = arith.subf %65, %97 : vector<32x16xf32>
    %99 = arith.mulf %74, %74 : vector<32x16xf32>
    %100 = vector.broadcast %67 : vector<1x16xf32> to vector<32x16xf32>
    %101 = arith.mulf %99, %100 : vector<32x16xf32>
    %102 = arith.addf %98, %101 : vector<32x16xf32>
    %cst_51 = arith.constant 8.000000e+00 : f32
    %103 = vector.broadcast %cst_51 : f32 to vector<1x16xf32>
    %104 = arith.divf %72, %103 : vector<1x16xf32>
    %cst_52 = arith.constant 5.000000e-01 : f32
    %105 = vector.broadcast %cst_52 : f32 to vector<1x16xf32>
    %106 = arith.mulf %105, %104 : vector<1x16xf32>
    %cst_53 = arith.constant dense<0.000000e+00> : vector<16xf32>
    %107 = vector.multi_reduction <add>, %94, %cst_53 [0] : vector<32x16xf32> to vector<16xf32>
    %108 = vector.shape_cast %107 : vector<16xf32> to vector<1x16xf32>
    %cst_54 = arith.constant 3.200000e+01 : f32
    %109 = vector.broadcast %cst_54 : f32 to vector<1x16xf32>
    %110 = arith.divf %108, %109 : vector<1x16xf32>
    %111 = arith.mulf %106, %110 : vector<1x16xf32>
    %112 = arith.mulf %85, %85 : vector<32x16xf32>
    %113 = arith.mulf %102, %112 : vector<32x16xf32>
    %cst_55 = arith.constant dense<0.000000e+00> : vector<16xf32>
    %114 = vector.multi_reduction <add>, %113, %cst_55 [0] : vector<32x16xf32> to vector<16xf32>
    %115 = vector.shape_cast %114 : vector<16xf32> to vector<1x16xf32>
    %cst_56 = arith.constant 3.200000e+01 : f32
    %116 = vector.broadcast %cst_56 : f32 to vector<1x16xf32>
    %117 = arith.divf %115, %116 : vector<1x16xf32>
    %118 = arith.addf %111, %117 : vector<1x16xf32>
    %c0_57 = arith.constant 0 : index
    %c0_58 = arith.constant 0 : index
    %c0_59 = arith.constant 0 : index
    %119 = vector.load %arg11[%c0_57, %c0_58, %c0_59] : memref<1x97x16xf32, #tpu.memory_space<vmem>>, vector<1x32x16xf32>
    %120 = vector.shape_cast %119 : vector<1x32x16xf32> to vector<32x16xf32>
    %121 = vector.shape_cast %52 : vector<32x16xf32> to vector<1x32x16xf32>
    tpu.vector_store %arg11[%c0_57, %c0_58, %c0_59], %121 {strides = array<i32>} : memref<1x97x16xf32, #tpu.memory_space<vmem>>, vector<1x32x16xf32>,
    %c0_60 = arith.constant 0 : index
    %c32 = arith.constant 32 : index
    %c0_61 = arith.constant 0 : index
    %122 = vector.load %arg11[%c0_60, %c32, %c0_61] : memref<1x97x16xf32, #tpu.memory_space<vmem>>, vector<1x32x16xf32>
    %123 = vector.shape_cast %122 : vector<1x32x16xf32> to vector<32x16xf32>
    %124 = vector.shape_cast %92 : vector<32x16xf32> to vector<1x32x16xf32>
    tpu.vector_store %arg11[%c0_60, %c32, %c0_61], %124 {strides = array<i32>} : memref<1x97x16xf32, #tpu.memory_space<vmem>>, vector<1x32x16xf32>,
    %c0_62 = arith.constant 0 : index
    %c64 = arith.constant 64 : index
    %c0_63 = arith.constant 0 : index
    %125 = vector.load %arg11[%c0_62, %c64, %c0_63] : memref<1x97x16xf32, #tpu.memory_space<vmem>>, vector<1x32x16xf32>
    %126 = vector.shape_cast %125 : vector<1x32x16xf32> to vector<32x16xf32>
    %127 = vector.shape_cast %56 : vector<32x16xf32> to vector<1x32x16xf32>
    tpu.vector_store %arg11[%c0_62, %c64, %c0_63], %127 {strides = array<i32>} : memref<1x97x16xf32, #tpu.memory_space<vmem>>, vector<1x32x16xf32>,
    %c0_64 = arith.constant 0 : index
    %c96 = arith.constant 96 : index
    %c0_65 = arith.constant 0 : index
    %128 = vector.load %arg11[%c0_64, %c96, %c0_65] : memref<1x97x16xf32, #tpu.memory_space<vmem>>, vector<1x1x16xf32>
    %129 = vector.shape_cast %128 : vector<1x1x16xf32> to vector<1x16xf32>
    %130 = vector.shape_cast %118 : vector<1x16xf32> to vector<1x1x16xf32>
    tpu.vector_store %arg11[%c0_64, %c96, %c0_65], %130 {strides = array<i32>} : memref<1x97x16xf32, #tpu.memory_space<vmem>>, vector<1x1x16xf32>,
    %c0_66 = arith.constant 0 : index
    %c0_67 = arith.constant 0 : index
    %c0_68 = arith.constant 0 : index
    %131 = vector.load %arg12[%c0_66, %c0_67, %c0_68] : memref<1x1x128xf32, #tpu.memory_space<vmem>>, vector<1x1x128xf32>
    %132 = vector.shape_cast %131 : vector<1x1x128xf32> to vector<1x128xf32>
    %133 = vector.shape_cast %33 : vector<1x128xf32> to vector<1x1x128xf32>
    tpu.vector_store %arg12[%c0_66, %c0_67, %c0_68], %133 {strides = array<i32>} : memref<1x1x128xf32, #tpu.memory_space<vmem>>, vector<1x1x128xf32>,
    return
  }
  func.func @transform_0(%arg0: i32) -> (i32, i32, i32) {
    %c0_i32 = arith.constant 0 : i32
    %c0_i32_0 = arith.constant 0 : i32
    %c0_i32_1 = arith.constant 0 : i32
    return %arg0, %c0_i32, %c0_i32_0 : i32, i32, i32
  }
  func.func @transform_1(%arg0: i32) -> (i32, i32, i32) {
    %c0_i32 = arith.constant 0 : i32
    %c0_i32_0 = arith.constant 0 : i32
    %c0_i32_1 = arith.constant 0 : i32
    return %arg0, %c0_i32, %c0_i32_0 : i32, i32, i32
  }
  func.func @transform_2(%arg0: i32) -> (i32, i32, i32) {
    %c0_i32 = arith.constant 0 : i32
    %c0_i32_0 = arith.constant 0 : i32
    %c0_i32_1 = arith.constant 0 : i32
    return %arg0, %c0_i32, %c0_i32_0 : i32, i32, i32
  }
  func.func @transform_3(%arg0: i32) -> (i32, i32) {
    %c0_i32 = arith.constant 0 : i32
    %c0_i32_0 = arith.constant 0 : i32
    %c0_i32_1 = arith.constant 0 : i32
    return %c0_i32, %c0_i32_0 : i32, i32
  }
  func.func @transform_4(%arg0: i32) -> (i32, i32) {
    %c0_i32 = arith.constant 0 : i32
    %c0_i32_0 = arith.constant 0 : i32
    %c0_i32_1 = arith.constant 0 : i32
    return %c0_i32, %c0_i32_0 : i32, i32
  }
  func.func @transform_5(%arg0: i32) -> (i32, i32) {
    %c0_i32 = arith.constant 0 : i32
    %c0_i32_0 = arith.constant 0 : i32
    %c0_i32_1 = arith.constant 0 : i32
    return %c0_i32, %c0_i32_0 : i32, i32
  }
  func.func @transform_6(%arg0: i32) -> (i32, i32) {
    %c0_i32 = arith.constant 0 : i32
    %c0_i32_0 = arith.constant 0 : i32
    %c0_i32_1 = arith.constant 0 : i32
    return %c0_i32, %c0_i32_0 : i32, i32
  }
  func.func @transform_7(%arg0: i32) -> (i32, i32) {
    %c0_i32 = arith.constant 0 : i32
    %c0_i32_0 = arith.constant 0 : i32
    %c0_i32_1 = arith.constant 0 : i32
    return %c0_i32, %c0_i32_0 : i32, i32
  }
  func.func @transform_8(%arg0: i32) -> (i32, i32) {
    %c0_i32 = arith.constant 0 : i32
    %c0_i32_0 = arith.constant 0 : i32
    %c0_i32_1 = arith.constant 0 : i32
    return %c0_i32, %c0_i32_0 : i32, i32
  }
  func.func @transform_9(%arg0: i32) -> (i32, i32) {
    %c0_i32 = arith.constant 0 : i32
    %c0_i32_0 = arith.constant 0 : i32
    %c0_i32_1 = arith.constant 0 : i32
    return %c0_i32, %c0_i32_0 : i32, i32
  }
  func.func @transform_10(%arg0: i32) -> (i32, i32, i32) {
    %c0_i32 = arith.constant 0 : i32
    %c0_i32_0 = arith.constant 0 : i32
    %c0_i32_1 = arith.constant 0 : i32
    return %arg0, %c0_i32, %c0_i32_0 : i32, i32, i32
  }
  func.func @transform_11(%arg0: i32) -> (i32, i32, i32) {
    %c0_i32 = arith.constant 0 : i32
    %c0_i32_0 = arith.constant 0 : i32
    %c0_i32_1 = arith.constant 0 : i32
    return %arg0, %c0_i32, %c0_i32_0 : i32, i32, i32
  }
}

</mosaic_0001>

<llo_original>
// kernel: tpu_custom_call.1
$region0: #{tpu_custom_call.1}
  #allocation0 [shape = 'u32[]', space=smem, size = 0x4, offset = 0x4, fixed_abs, tag = 'smem constant byte address 0x4 - core index']
  #allocation1 [shape = 'u32[144,128]{1,0:T(1,128)}', space=vmem, size = 0x12000, scoped, tag = 'internal scratch']
  #allocation2 [shape = 'f32[1,1]{1,0:T(1,128)S(1)}', space=vmem, size = 0x200, scoped, tag = 'scoped memory for tpu_custom_call.1']
  %s0 = inlined_call_operand.vmem [shape: f32[2,32,128], index: 0, kind: input, shape index: {}]
  %s1 = inlined_call_operand.vmem [shape: f32[2,32,128], index: 1, kind: input, shape index: {}]
  %s2 = inlined_call_operand.vmem [shape: f32[2,1,128], index: 2, kind: input, shape index: {}]
  %s3 = inlined_call_operand.vmem [shape: f32[128,16], index: 3, kind: input, shape index: {}]
  %s4 = inlined_call_operand.vmem [shape: f32[16,32], index: 4, kind: input, shape index: {}]
  %s5 = inlined_call_operand.vmem [shape: f32[16,1], index: 5, kind: input, shape index: {}]
  %s6 = inlined_call_operand.vmem [shape: f32[8,16], index: 6, kind: input, shape index: {}]
  %s7 = inlined_call_operand.vmem [shape: f32[8,1], index: 7, kind: input, shape index: {}]
  %s8 = inlined_call_operand.vmem [shape: f32[8,1], index: 8, kind: input, shape index: {}]
  %s9 = inlined_call_operand.<no memory space> [shape: f32[1,1], index: 9, kind: input, shape index: {}]
  %s10 = inlined_call_operand.vmem [shape: f32[2,97,16], index: 10, kind: output, shape index: {0}]
  %s11 = inlined_call_operand.hbm [shape: f32[2,1,128], index: 11, kind: output, shape index: {1}]
  %12 = xla_tuple %s10, %s11
  %s13 = sld [smem:[#allocation0]]
  $region81: #{tpu_custom_call.1} parent=0
    _
  %s15 = ssub.s32 1, %s13
  %s16 = scalar_select 0, %s15, %s13
  %v17 = vstv %s9
  %18 = vst [vmem:[#allocation2] sm:$0x1] %v17
  $region1: #{tpu_custom_call.1} parent=0
    #allocation3 [shape = 'u8[1024]{0}', space=vmem, size = 0x400, scoped, tag = 'output window, operand 1']
    #allocation4 [shape = 's32[2]{0}', space=sflag, size = 0x8, scoped, tag = 'scoped memory for tpu_custom_call.1']
    %19 = vsyncpa [#allocation4], 0
    %s20 = scalar_lea.sflag [#allocation4], 1
    %21 = vsyncpa %s20, 0
    loop: start=0, step=1, limit=4
    $region2: #{tpu_custom_call.1} parent=1 // loop_pre_header
      _
    $region3: #{tpu_custom_call.1} parent=1 // loop_header
      %s23 = sphi 0, %s27
      %p24 = scmp.ge.s32.totalorder %s23, 4
      %s33 = sphi 0, %s35
      %s36 = sphi 0, %s33
      %s37 = sphi 0, %s36
      %s53 = sphi 0, %s37
      %s59 = sphi 0, %s61
      %s62 = sphi 0, %s59
      %s63 = sphi 0, %s62
      %s79 = sphi 0, %s63
      %s85 = sphi 0, %s87
      %s88 = sphi 0, %s85
      %s89 = sphi 0, %s88
      %s105 = sphi 0, %s89
      %s109 = sphi 0, %s109
      %s111 = sphi 0, %s109
      %s112 = sphi 0, %s111
      %s126 = sphi 0, %s112
      %s130 = sphi 0, %s130
      %s132 = sphi 0, %s130
      %s133 = sphi 0, %s132
      %s147 = sphi 0, %s133
      %s151 = sphi 0, %s151
      %s153 = sphi 0, %s151
      %s154 = sphi 0, %s153
      %s168 = sphi 0, %s154
      %s172 = sphi 0, %s172
      %s174 = sphi 0, %s172
      %s175 = sphi 0, %s174
      %s189 = sphi 0, %s175
      %s193 = sphi 0, %s193
      %s195 = sphi 0, %s193
      %s196 = sphi 0, %s195
      %s210 = sphi 0, %s196
      %s214 = sphi 0, %s214
      %s216 = sphi 0, %s214
      %s217 = sphi 0, %s216
      %s231 = sphi 0, %s217
      %s235 = sphi 0, %s235
      %s237 = sphi 0, %s235
      %s238 = sphi 0, %s237
      %s252 = sphi 0, %s238
      %s258 = sphi 0, %s260
      %s261 = sphi 0, %s258
      %s262 = sphi 0, %s261
      %s278 = sphi 0, %s262
      %s284 = sphi 0, %s286
      %s287 = sphi 0, %s284
      %s288 = sphi 0, %s287
      %s304 = sphi 0, %s288
    $region4: #{tpu_custom_call.1} parent=1 // loop_header_branch
      %26 = sbr.rel (%p24) target = $region8
    $region5: #{tpu_custom_call.1} parent=1 // loop_body
      %s28 = ssub.s32 %s23, 1
      %s29 = ssub.s32 %s23, 2
      %s30 = sadd.s32 %s23, 1
      %s31 = ssub.s32 %s23, %s30
      %p32 = scmp.eq.s32.totalorder %s31, 0
      %s34 = sadd.s32 %s33, 1
      %s35 = scalar_select %p32, %s33, %s34
      %p38 = pneg %p32
      %p39 = scmp.eq.s32.totalorder %s23, 1
      %p40 = por %p38, %p39
      %p41 = scmp.ne.s32.totalorder %s33, %s36
      %p42 = scmp.eq.s32.totalorder %s23, 0
      %p43 = por %p41, %p42
      %p44 = scmp.ne.s32.totalorder %s33, %s36
      %p45 = scmp.eq.s32.totalorder %s28, 1
      %p46 = por %p44, %p45
      %p47 = scmp.ne.s32.totalorder %s36, %s37
      %p48 = scmp.eq.s32.totalorder %s28, 0
      %p49 = por %p47, %p48
      %p50 = scmp.ne.s32.totalorder %s36, %s37
      %p51 = scmp.eq.s32.totalorder %s29, 1
      %p52 = por %p50, %p51
      %p54 = scmp.ne.s32.totalorder %s37, %s53
      %p55 = scmp.eq.s32.totalorder %s29, 0
      %p56 = por %p54, %p55
      %s57 = ssub.s32 %s23, %s30
      %p58 = scmp.eq.s32.totalorder %s57, 0
      %s60 = sadd.s32 %s59, 1
      %s61 = scalar_select %p58, %s59, %s60
      %p64 = pneg %p58
      %p65 = scmp.eq.s32.totalorder %s23, 1
      %p66 = por %p64, %p65
      %p67 = scmp.ne.s32.totalorder %s59, %s62
      %p68 = scmp.eq.s32.totalorder %s23, 0
      %p69 = por %p67, %p68
      %p70 = scmp.ne.s32.totalorder %s59, %s62
      %p71 = scmp.eq.s32.totalorder %s28, 1
      %p72 = por %p70, %p71
      %p73 = scmp.ne.s32.totalorder %s62, %s63
      %p74 = scmp.eq.s32.totalorder %s28, 0
      %p75 = por %p73, %p74
      %p76 = scmp.ne.s32.totalorder %s62, %s63
      %p77 = scmp.eq.s32.totalorder %s29, 1
      %p78 = por %p76, %p77
      %p80 = scmp.ne.s32.totalorder %s63, %s79
      %p81 = scmp.eq.s32.totalorder %s29, 0
      %p82 = por %p80, %p81
      %s83 = ssub.s32 %s23, %s30
      %p84 = scmp.eq.s32.totalorder %s83, 0
      %s86 = sadd.s32 %s85, 1
      %s87 = scalar_select %p84, %s85, %s86
      %p90 = pneg %p84
      %p91 = scmp.eq.s32.totalorder %s23, 1
      %p92 = por %p90, %p91
      %p93 = scmp.ne.s32.totalorder %s85, %s88
      %p94 = scmp.eq.s32.totalorder %s23, 0
      %p95 = por %p93, %p94
      %p96 = scmp.ne.s32.totalorder %s85, %s88
      %p97 = scmp.eq.s32.totalorder %s28, 1
      %p98 = por %p96, %p97
      %p99 = scmp.ne.s32.totalorder %s88, %s89
      %p100 = scmp.eq.s32.totalorder %s28, 0
      %p101 = por %p99, %p100
      %p102 = scmp.ne.s32.totalorder %s88, %s89
      %p103 = scmp.eq.s32.totalorder %s29, 1
      %p104 = por %p102, %p103
      %p106 = scmp.ne.s32.totalorder %s89, %s105
      %p107 = scmp.eq.s32.totalorder %s29, 0
      %p108 = por %p106, %p107
      %s110 = sadd.s32 %s109, 1
      %p113 = scmp.eq.s32.totalorder %s23, 1
      %p114 = scmp.ne.s32.totalorder %s109, %s111
      %p115 = scmp.eq.s32.totalorder %s23, 0
      %p116 = por %p114, %p115
      %p117 = scmp.ne.s32.totalorder %s109, %s111
      %p118 = scmp.eq.s32.totalorder %s28, 1
      %p119 = por %p117, %p118
      %p120 = scmp.ne.s32.totalorder %s111, %s112
      %p121 = scmp.eq.s32.totalorder %s28, 0
      %p122 = por %p120, %p121
      %p123 = scmp.ne.s32.totalorder %s111, %s112
      %p124 = scmp.eq.s32.totalorder %s29, 1
      %p125 = por %p123, %p124
      %p127 = scmp.ne.s32.totalorder %s112, %s126
      %p128 = scmp.eq.s32.totalorder %s29, 0
      %p129 = por %p127, %p128
      %s131 = sadd.s32 %s130, 1
      %p134 = scmp.eq.s32.totalorder %s23, 1
      %p135 = scmp.ne.s32.totalorder %s130, %s132
      %p136 = scmp.eq.s32.totalorder %s23, 0
      %p137 = por %p135, %p136
      %p138 = scmp.ne.s32.totalorder %s130, %s132
      %p139 = scmp.eq.s32.totalorder %s28, 1
      %p140 = por %p138, %p139
      %p141 = scmp.ne.s32.totalorder %s132, %s133
      %p142 = scmp.eq.s32.totalorder %s28, 0
      %p143 = por %p141, %p142
      %p144 = scmp.ne.s32.totalorder %s132, %s133
      %p145 = scmp.eq.s32.totalorder %s29, 1
      %p146 = por %p144, %p145
      %p148 = scmp.ne.s32.totalorder %s133, %s147
      %p149 = scmp.eq.s32.totalorder %s29, 0
      %p150 = por %p148, %p149
      %s152 = sadd.s32 %s151, 1
      %p155 = scmp.eq.s32.totalorder %s23, 1
      %p156 = scmp.ne.s32.totalorder %s151, %s153
      %p157 = scmp.eq.s32.totalorder %s23, 0
      %p158 = por %p156, %p157
      %p159 = scmp.ne.s32.totalorder %s151, %s153
      %p160 = scmp.eq.s32.totalorder %s28, 1
      %p161 = por %p159, %p160
      %p162 = scmp.ne.s32.totalorder %s153, %s154
      %p163 = scmp.eq.s32.totalorder %s28, 0
      %p164 = por %p162, %p163
      %p165 = scmp.ne.s32.totalorder %s153, %s154
      %p166 = scmp.eq.s32.totalorder %s29, 1
      %p167 = por %p165, %p166
      %p169 = scmp.ne.s32.totalorder %s154, %s168
      %p170 = scmp.eq.s32.totalorder %s29, 0
      %p171 = por %p169, %p170
      %s173 = sadd.s32 %s172, 1
      %p176 = scmp.eq.s32.totalorder %s23, 1
      %p177 = scmp.ne.s32.totalorder %s172, %s174
      %p178 = scmp.eq.s32.totalorder %s23, 0
      %p179 = por %p177, %p178
      %p180 = scmp.ne.s32.totalorder %s172, %s174
      %p181 = scmp.eq.s32.totalorder %s28, 1
      %p182 = por %p180, %p181
      %p183 = scmp.ne.s32.totalorder %s174, %s175
      %p184 = scmp.eq.s32.totalorder %s28, 0
      %p185 = por %p183, %p184
      %p186 = scmp.ne.s32.totalorder %s174, %s175
      %p187 = scmp.eq.s32.totalorder %s29, 1
      %p188 = por %p186, %p187
      %p190 = scmp.ne.s32.totalorder %s175, %s189
      %p191 = scmp.eq.s32.totalorder %s29, 0
      %p192 = por %p190, %p191
      %s194 = sadd.s32 %s193, 1
      %p197 = scmp.eq.s32.totalorder %s23, 1
      %p198 = scmp.ne.s32.totalorder %s193, %s195
      %p199 = scmp.eq.s32.totalorder %s23, 0
      %p200 = por %p198, %p199
      %p201 = scmp.ne.s32.totalorder %s193, %s195
      %p202 = scmp.eq.s32.totalorder %s28, 1
      %p203 = por %p201, %p202
      %p204 = scmp.ne.s32.totalorder %s195, %s196
      %p205 = scmp.eq.s32.totalorder %s28, 0
      %p206 = por %p204, %p205
      %p207 = scmp.ne.s32.totalorder %s195, %s196
      %p208 = scmp.eq.s32.totalorder %s29, 1
      %p209 = por %p207, %p208
      %p211 = scmp.ne.s32.totalorder %s196, %s210
      %p212 = scmp.eq.s32.totalorder %s29, 0
      %p213 = por %p211, %p212
      %s215 = sadd.s32 %s214, 1
      %p218 = scmp.eq.s32.totalorder %s23, 1
      %p219 = scmp.ne.s32.totalorder %s214, %s216
      %p220 = scmp.eq.s32.totalorder %s23, 0
      %p221 = por %p219, %p220
      %p222 = scmp.ne.s32.totalorder %s214, %s216
      %p223 = scmp.eq.s32.totalorder %s28, 1
      %p224 = por %p222, %p223
      %p225 = scmp.ne.s32.totalorder %s216, %s217
      %p226 = scmp.eq.s32.totalorder %s28, 0
      %p227 = por %p225, %p226
      %p228 = scmp.ne.s32.totalorder %s216, %s217
      %p229 = scmp.eq.s32.totalorder %s29, 1
      %p230 = por %p228, %p229
      %p232 = scmp.ne.s32.totalorder %s217, %s231
      %p233 = scmp.eq.s32.totalorder %s29, 0
      %p234 = por %p232, %p233
      %s236 = sadd.s32 %s235, 1
      %p239 = scmp.eq.s32.totalorder %s23, 1
      %p240 = scmp.ne.s32.totalorder %s235, %s237
      %p241 = scmp.eq.s32.totalorder %s23, 0
      %p242 = por %p240, %p241
      %p243 = scmp.ne.s32.totalorder %s235, %s237
      %p244 = scmp.eq.s32.totalorder %s28, 1
      %p245 = por %p243, %p244
      %p246 = scmp.ne.s32.totalorder %s237, %s238
      %p247 = scmp.eq.s32.totalorder %s28, 0
      %p248 = por %p246, %p247
      %p249 = scmp.ne.s32.totalorder %s237, %s238
      %p250 = scmp.eq.s32.totalorder %s29, 1
      %p251 = por %p249, %p250
      %p253 = scmp.ne.s32.totalorder %s238, %s252
      %p254 = scmp.eq.s32.totalorder %s29, 0
      %p255 = por %p253, %p254
      %s256 = ssub.s32 %s23, %s30
      %p257 = scmp.eq.s32.totalorder %s256, 0
      %s259 = sadd.s32 %s258, 1
      %s260 = scalar_select %p257, %s258, %s259
      %p263 = pneg %p257
      %p264 = scmp.eq.s32.totalorder %s23, 1
      %p265 = por %p263, %p264
      %p266 = scmp.ne.s32.totalorder %s258, %s261
      %p267 = scmp.eq.s32.totalorder %s23, 0
      %p268 = por %p266, %p267
      %p269 = scmp.ne.s32.totalorder %s258, %s261
      %p270 = scmp.eq.s32.totalorder %s28, 1
      %p271 = por %p269, %p270
      %p272 = scmp.ne.s32.totalorder %s261, %s262
      %p273 = scmp.eq.s32.totalorder %s28, 0
      %p274 = por %p272, %p273
      %p275 = scmp.ne.s32.totalorder %s261, %s262
      %p276 = scmp.eq.s32.totalorder %s29, 1
      %p277 = por %p275, %p276
      %p279 = scmp.ne.s32.totalorder %s262, %s278
      %p280 = scmp.eq.s32.totalorder %s29, 0
      %p281 = por %p279, %p280
      %s282 = ssub.s32 %s23, %s30
      %p283 = scmp.eq.s32.totalorder %s282, 0
      %s285 = sadd.s32 %s284, 1
      %s286 = scalar_select %p283, %s284, %s285
      %p289 = pneg %p283
      %p290 = scmp.eq.s32.totalorder %s23, 1
      %p291 = por %p289, %p290
      %p292 = scmp.ne.s32.totalorder %s284, %s287
      %p293 = scmp.eq.s32.totalorder %s23, 0
      %p294 = por %p292, %p293
      %p295 = scmp.ne.s32.totalorder %s284, %s287
      %p296 = scmp.eq.s32.totalorder %s28, 1
      %p297 = por %p295, %p296
      %p298 = scmp.ne.s32.totalorder %s287, %s288
      %p299 = scmp.eq.s32.totalorder %s28, 0
      %p300 = por %p298, %p299
      %p301 = scmp.ne.s32.totalorder %s287, %s288
      %p302 = scmp.eq.s32.totalorder %s29, 1
      %p303 = por %p301, %p302
      %p305 = scmp.ne.s32.totalorder %s288, %s304
      %p306 = scmp.eq.s32.totalorder %s29, 0
      %p307 = por %p305, %p306
      %p308 = scmp.le.s32.totalorder 1, %s23
      %p309 = scmp.lt.s32.totalorder %s23, 3
      %p310 = pnand %p308, %p309
      %p311 = pneg %p310
      // Predicated region
      $region9: #{tpu_custom_call.1} parent=5 // pred_check
        _
      $region10: #{tpu_custom_call.1} parent=5 // pred_check_branch
        %313 = sbr.rel (%p310) target = $region12
      $region11: #{tpu_custom_call.1} parent=5 // pred_region
        %s314 = ssub.s32 %s23, 1
        // Predicated region
        $region13: #{tpu_custom_call.1} parent=11 // pred_check
          %p315 = pneg %p122
        $region14: #{tpu_custom_call.1} parent=11 // pred_check_branch
          %317 = sbr.rel (%p315) target = $region16
        $region15: #{tpu_custom_call.1} parent=11 // pred_region
          _
        $region16: #{tpu_custom_call.1} parent=11 // pred_fallthru
          _
        // Predicated region
        $region17: #{tpu_custom_call.1} parent=11 // pred_check
          %p318 = pneg %p143
        $region18: #{tpu_custom_call.1} parent=11 // pred_check_branch
          %320 = sbr.rel (%p318) target = $region20
        $region19: #{tpu_custom_call.1} parent=11 // pred_region
          _
        $region20: #{tpu_custom_call.1} parent=11 // pred_fallthru
          _
        // Predicated region
        $region21: #{tpu_custom_call.1} parent=11 // pred_check
          %p321 = pneg %p164
        $region22: #{tpu_custom_call.1} parent=11 // pred_check_branch
          %323 = sbr.rel (%p321) target = $region24
        $region23: #{tpu_custom_call.1} parent=11 // pred_region
          _
        $region24: #{tpu_custom_call.1} parent=11 // pred_fallthru
          _
        // Predicated region
        $region25: #{tpu_custom_call.1} parent=11 // pred_check
          %p324 = pneg %p185
        $region26: #{tpu_custom_call.1} parent=11 // pred_check_branch
          %326 = sbr.rel (%p324) target = $region28
        $region27: #{tpu_custom_call.1} parent=11 // pred_region
          _
        $region28: #{tpu_custom_call.1} parent=11 // pred_fallthru
          _
        // Predicated region
        $region29: #{tpu_custom_call.1} parent=11 // pred_check
          %p327 = pneg %p206
        $region30: #{tpu_custom_call.1} parent=11 // pred_check_branch
          %329 = sbr.rel (%p327) target = $region32
        $region31: #{tpu_custom_call.1} parent=11 // pred_region
          _
        $region32: #{tpu_custom_call.1} parent=11 // pred_fallthru
          _
        // Predicated region
        $region33: #{tpu_custom_call.1} parent=11 // pred_check
          %p330 = pneg %p227
        $region34: #{tpu_custom_call.1} parent=11 // pred_check_branch
          %332 = sbr.rel (%p330) target = $region36
        $region35: #{tpu_custom_call.1} parent=11 // pred_region
          _
        $region36: #{tpu_custom_call.1} parent=11 // pred_fallthru
          _
        // Predicated region
        $region37: #{tpu_custom_call.1} parent=11 // pred_check
          %p333 = pneg %p248
        $region38: #{tpu_custom_call.1} parent=11 // pred_check_branch
          %335 = sbr.rel (%p333) target = $region40
        $region39: #{tpu_custom_call.1} parent=11 // pred_region
          _
        $region40: #{tpu_custom_call.1} parent=11 // pred_fallthru
          _
      $region12: #{tpu_custom_call.1} parent=5 // pred_fallthru
        _
      %p336 = scmp.lt.s32.totalorder %s23, 2
      // Predicated region
      $region41: #{tpu_custom_call.1} parent=5 // pred_check
        %p337 = pneg %p336
      $region42: #{tpu_custom_call.1} parent=5 // pred_check_branch
        %339 = sbr.rel (%p337) target = $region44
      $region43: #{tpu_custom_call.1} parent=5 // pred_region
        // Predicated region
        $region45: #{tpu_custom_call.1} parent=43 // pred_check
          %p340 = pneg %p43
        $region46: #{tpu_custom_call.1} parent=43 // pred_check_branch
          %342 = sbr.rel (%p340) target = $region48
        $region47: #{tpu_custom_call.1} parent=43 // pred_region
          %p343 = scmp.lt.s32.totalorder %s23, 1
          %s344 = scalar_select %p343, %s23, 1
          %s345 = smul.addr %s344, 4
          %s346 = smul.addr %s345, 8
          %s347 = scalar_lea.vmem %s0, %s346
        $region48: #{tpu_custom_call.1} parent=43 // pred_fallthru
          _
        // Predicated region
        $region49: #{tpu_custom_call.1} parent=43 // pred_check
          %p348 = pneg %p69
        $region50: #{tpu_custom_call.1} parent=43 // pred_check_branch
          %350 = sbr.rel (%p348) target = $region52
        $region51: #{tpu_custom_call.1} parent=43 // pred_region
          %p351 = scmp.lt.s32.totalorder %s23, 1
          %s352 = scalar_select %p351, %s23, 1
          %s353 = smul.addr %s352, 4
          %s354 = smul.addr %s353, 8
          %s355 = scalar_lea.vmem %s1, %s354
        $region52: #{tpu_custom_call.1} parent=43 // pred_fallthru
          _
        // Predicated region
        $region53: #{tpu_custom_call.1} parent=43 // pred_check
          %p356 = pneg %p95
        $region54: #{tpu_custom_call.1} parent=43 // pred_check_branch
          %358 = sbr.rel (%p356) target = $region56
        $region55: #{tpu_custom_call.1} parent=43 // pred_region
          %p359 = scmp.lt.s32.totalorder %s23, 1
          %s360 = scalar_select %p359, %s23, 1
          %s361 = scalar_lea.vmem %s2, %s360
        $region56: #{tpu_custom_call.1} parent=43 // pred_fallthru
          _
      $region44: #{tpu_custom_call.1} parent=5 // pred_fallthru
        _
      %p362 = scmp.le.s32.totalorder 1, %s23
      %p363 = scmp.lt.s32.totalorder %s23, 3
      %p364 = pnand %p362, %p363
      %p365 = pneg %p364
      // Predicated region
      $region57: #{tpu_custom_call.1} parent=5 // pred_check
        _
      $region58: #{tpu_custom_call.1} parent=5 // pred_check_branch
        %367 = sbr.rel (%p364) target = $region60
      $region59: #{tpu_custom_call.1} parent=5 // pred_region
        %s368 = ssub.s32 %s23, 1
        %p369 = scmp.lt.s32.totalorder %s28, 1
        %s370 = scalar_select %p369, %s28, 1
        %s371 = smul.addr %s370, 4
        %s372 = smul.addr %s371, 8
        %s373 = scalar_lea.vmem %s0, %s372
        %p374 = pneg %p49
        %p375 = pneg %p46
        %p376 = scmp.lt.s32.totalorder %s28, 1
        %s377 = scalar_select %p376, %s28, 1
        %s378 = smul.addr %s377, 4
        %s379 = smul.addr %s378, 8
        %s380 = scalar_lea.vmem %s1, %s379
        %p381 = pneg %p75
        %p382 = pneg %p72
        %p383 = scmp.lt.s32.totalorder %s28, 1
        %s384 = scalar_select %p383, %s28, 1
        %s385 = scalar_lea.vmem %s2, %s384
        %p386 = pneg %p101
        %p387 = pneg %p98
        %p388 = pneg %p122
        %p389 = pneg %p119
        %p390 = pneg %p143
        %p391 = pneg %p140
        %p392 = pneg %p164
        %p393 = pneg %p161
        %p394 = pneg %p185
        %p395 = pneg %p182
        %p396 = pneg %p206
        %p397 = pneg %p203
        %p398 = pneg %p227
        %p399 = pneg %p224
        %p400 = pneg %p248
        %p401 = pneg %p245
        %p402 = pneg %p274
        %p403 = pneg %p271
        %p404 = scmp.lt.s32.totalorder %s28, 1
        %s405 = scalar_select %p404, %s28, 1
        %s406 = smul.addr %s405, 13
        %s407 = smul.addr %s406, 8
        %s408 = scalar_lea.vmem %s10, %s407
        %p409 = pneg %p300
        %p410 = pneg %p297
        %s411 = sand.u32 %s287, 1
        %s412 = scalar_lea.sflag [#allocation4], %s411
        %s413 = sand.u32 %s287, 1
        %s414 = scalar_lea.vmem [#allocation3], %s413
        %p415 = scmp.lt.s32.totalorder %s28, 1
        %s416 = scalar_select %p415, %s28, 1
        %s417 = smul.addr %s416, 4
        %s418 = smul.addr %s417, 8
        %s419 = scalar_lea.vmem %s0, %s418
        %p420 = scmp.lt.s32.totalorder %s28, 1
        %s421 = scalar_select %p420, %s28, 1
        %s422 = smul.addr %s421, 4
        %s423 = smul.addr %s422, 8
        %s424 = scalar_lea.vmem %s1, %s423
        %p425 = scmp.lt.s32.totalorder %s28, 1
        %s426 = scalar_select %p425, %s28, 1
        %s427 = scalar_lea.vmem %s2, %s426
        %p428 = scmp.lt.s32.totalorder %s28, 1
        %s429 = scalar_select %p428, %s28, 1
        %s430 = smul.addr %s429, 13
        %s431 = smul.addr %s430, 8
        %s432 = scalar_lea.vmem %s10, %s431
        %v433 = vld [vmem:[%s419] sm:$0xff]
        %v434 = vld [vmem:[%s419 + $0x8] sm:$0xff]
        %v435 = vld [vmem:[%s419 + $0x10] sm:$0xff]
        %v436 = vld [vmem:[%s419 + $0x18] sm:$0xff]
        %v437 = vld [vmem:[%s424] sm:$0xff]
        %v438 = vld [vmem:[%s424 + $0x8] sm:$0xff]
        %v439 = vld [vmem:[%s424 + $0x10] sm:$0xff]
        %v440 = vld [vmem:[%s424 + $0x18] sm:$0xff]
        %v441 = vld [vmem:[%s427] sm:$0x1]
        %v442 = vld [vmem:[%s3] sm:$0xff]
        %v443 = vld [vmem:[%s3 + $0x8] sm:$0xff]
        %v444 = vld [vmem:[%s3 + $0x10] sm:$0xff]
        %v445 = vld [vmem:[%s3 + $0x18] sm:$0xff]
        %v446 = vld [vmem:[%s3 + $0x20] sm:$0xff]
        %v447 = vld [vmem:[%s3 + $0x28] sm:$0xff]
        %v448 = vld [vmem:[%s3 + $0x30] sm:$0xff]
        %v449 = vld [vmem:[%s3 + $0x38] sm:$0xff]
        %v450 = vld [vmem:[%s3 + $0x40] sm:$0xff]
        %v451 = vld [vmem:[%s3 + $0x48] sm:$0xff]
        %v452 = vld [vmem:[%s3 + $0x50] sm:$0xff]
        %v453 = vld [vmem:[%s3 + $0x58] sm:$0xff]
        %v454 = vld [vmem:[%s3 + $0x60] sm:$0xff]
        %v455 = vld [vmem:[%s3 + $0x68] sm:$0xff]
        %v456 = vld [vmem:[%s3 + $0x70] sm:$0xff]
        %v457 = vld [vmem:[%s3 + $0x78] sm:$0xff]
        %v458 = vld [vmem:[%s4] sm:$0xff]
        %v459 = vld [vmem:[%s4 + $0x8] sm:$0xff]
        %v460 = vld [vmem:[%s5] sm:$0xff]
        %v461 = vld [vmem:[%s5 + $0x8] sm:$0xff]
        %463 = vset.pattern.permute.xlu0 0
        %464 = vperm.xlu0 %463, %v460
        %v465 = vpop.permute.xlu0 %464
        %468 = vset.pattern.permute.xlu0 0
        %469 = vperm.xlu0 %468, %v461
        %v470 = vpop.permute.xlu0 %469
        %vm472 = vcmask 261120
        %v474 = vsel %vm472, %v458, 0
        %v477 = vsel %vm472, %v459, 0
        %479 = vmatprep.subr.mxu0 0.0
        %480 = vmatpush1.msra.mxu0 %v433
        %481 = vmatprep.subr.mxu0 0.0
        %482 = vmatpush1.msra.mxu0 %v434
        %483 = vmatprep.subr.mxu0 0.0
        %484 = vmatpush1.msra.mxu0 %v435
        %485 = vmatprep.subr.mxu0 0.0
        %486 = vmatpush1.msra.mxu0 %v436
        %487 = vmatprep.subr.mxu0 0.0
        %488 = vmatpush1.msra.mxu0 0.0
        %489 = vmatprep.subr.mxu0 0.0
        %490 = vmatpush1.msra.mxu0 0.0
        %491 = vmatprep.subr.mxu0 0.0
        %492 = vmatpush1.msra.mxu0 0.0
        %493 = vmatprep.subr.mxu0 0.0
        %494 = vmatpush1.msra.mxu0 0.0
        %495 = vmatprep.subr.mxu0 0.0
        %496 = vmatpush1.msra.mxu0 0.0
        %497 = vmatprep.subr.mxu0 0.0
        %498 = vmatpush1.msra.mxu0 0.0
        %499 = vmatprep.subr.mxu0 0.0
        %500 = vmatpush1.msra.mxu0 0.0
        %501 = vmatprep.subr.mxu0 0.0
        %502 = vmatpush1.msra.mxu0 0.0
        %503 = vmatprep.subr.mxu0 0.0
        %504 = vmatpush1.msra.mxu0 0.0
        %505 = vmatprep.subr.mxu0 0.0
        %506 = vmatpush1.msra.mxu0 0.0
        %507 = vmatprep.subr.mxu0 0.0
        %508 = vmatpush1.msra.mxu0 0.0
        %509 = vmatprep.subr.mxu0 0.0
        %510 = vmatpush1.msra.mxu0 0.0
        %511 = vmatprep.subr.mxu0 0.0
        %512 = vmatpush1.msra.mxu0 0.0
        %513 = vmatprep.subr.mxu0 0.0
        %514 = vmatpush1.msra.mxu0 0.0
        %515 = vmatprep.subr.mxu0 0.0
        %516 = vmatpush1.msra.mxu0 0.0
        %517 = vmatprep.subr.mxu0 0.0
        %518 = vmatpush1.msra.mxu0 0.0
        %519 = vmatprep.subr.mxu0 0.0
        %520 = vmatpush1.msra.mxu0 0.0
        %521 = vmatprep.subr.mxu0 0.0
        %522 = vmatpush1.msra.mxu0 0.0
        %523 = vmatprep.subr.mxu0 0.0
        %524 = vmatpush1.msra.mxu0 0.0
        %525 = vmatprep.subr.mxu0 0.0
        %526 = vmatpush1.msra.mxu0 0.0
        %527 = vmatprep.subr.mxu0 0.0
        %528 = vmatpush1.msra.mxu0 0.0
        %529 = vmatprep.subr.mxu0 0.0
        %530 = vmatpush1.msra.mxu0 0.0
        %531 = vmatprep.subr.mxu0 0.0
        %532 = vmatpush1.msra.mxu0 0.0
        %533 = vmatprep.subr.mxu0 0.0
        %534 = vmatpush1.msra.mxu0 0.0
        %535 = vmatprep.subr.mxu0 0.0
        %536 = vmatpush1.msra.mxu0 0.0
        %537 = vmatprep.subr.mxu0 0.0
        %538 = vmatpush1.msra.mxu0 0.0
        %539 = vmatprep.subr.mxu0 0.0
        %540 = vmatpush1.msra.mxu0 0.0
        %541 = vmatprep.subr.mxu0 0.0
        %542 = vmatpush1.msra.mxu0 0.0
        %543 = vmatprep.mubr.f32.mxu0 0.0
        %544 = vmatmul.mubr.f32.gmra.mrb[0].mxu0 %v474
        %v545 = vpop.f32.mrb[0].mxu0
        %v546 = vadd.f32 %v465, %v545
        %v547 = vpop.f32.mrb[0].mxu0
        %548 = vmatprep.mubr.f32.mxu0 0.0
        %549 = vmatmul.mubr.f32.gmra.mrb[0].mxu0 %v477
        %v550 = vpop.f32.mrb[0].mxu0
        %v551 = vadd.f32 %v470, %v550
        %v552 = vpop.f32.mrb[0].mxu0
        %553 = vdwg.mxu0
        %v554 = vtanh.pop %v546
        %v555 = vtanh.pop %v551
        %v556 = vld [vmem:[%s6] sm:$0xff]
        %v557 = vld [vmem:[%s7] sm:$0xff]
        %559 = vset.pattern.permute.xlu0 0
        %560 = vperm.xlu0 %559, %v557
        %v561 = vpop.permute.xlu0 %560
        %vm563 = vcmask 130048
        %v565 = vsel %vm563, %v556, 0
        %567 = vmatprep.subr.mxu0 0.0
        %568 = vmatpush1.msra.mxu0 %v554
        %569 = vmatprep.subr.mxu0 0.0
        %570 = vmatpush1.msra.mxu0 %v555
        %571 = vmatprep.subr.mxu0 0.0
        %572 = vmatpush1.msra.mxu0 0.0
        %573 = vmatprep.subr.mxu0 0.0
        %574 = vmatpush1.msra.mxu0 0.0
        %575 = vmatprep.subr.mxu0 0.0
        %576 = vmatpush1.msra.mxu0 0.0
        %577 = vmatprep.subr.mxu0 0.0
        %578 = vmatpush1.msra.mxu0 0.0
        %579 = vmatprep.subr.mxu0 0.0
        %580 = vmatpush1.msra.mxu0 0.0
        %581 = vmatprep.subr.mxu0 0.0
        %582 = vmatpush1.msra.mxu0 0.0
        %583 = vmatprep.subr.mxu0 0.0
        %584 = vmatpush1.msra.mxu0 0.0
        %585 = vmatprep.subr.mxu0 0.0
        %586 = vmatpush1.msra.mxu0 0.0
        %587 = vmatprep.subr.mxu0 0.0
        %588 = vmatpush1.msra.mxu0 0.0
        %589 = vmatprep.subr.mxu0 0.0
        %590 = vmatpush1.msra.mxu0 0.0
        %591 = vmatprep.subr.mxu0 0.0
        %592 = vmatpush1.msra.mxu0 0.0
        %593 = vmatprep.subr.mxu0 0.0
        %594 = vmatpush1.msra.mxu0 0.0
        %595 = vmatprep.subr.mxu0 0.0
        %596 = vmatpush1.msra.mxu0 0.0
        %597 = vmatprep.subr.mxu0 0.0
        %598 = vmatpush1.msra.mxu0 0.0
        %599 = vmatprep.subr.mxu0 0.0
        %600 = vmatpush1.msra.mxu0 0.0
        %601 = vmatprep.subr.mxu0 0.0
        %602 = vmatpush1.msra.mxu0 0.0
        %603 = vmatprep.subr.mxu0 0.0
        %604 = vmatpush1.msra.mxu0 0.0
        %605 = vmatprep.subr.mxu0 0.0
        %606 = vmatpush1.msra.mxu0 0.0
        %607 = vmatprep.subr.mxu0 0.0
        %608 = vmatpush1.msra.mxu0 0.0
        %609 = vmatprep.subr.mxu0 0.0
        %610 = vmatpush1.msra.mxu0 0.0
        %611 = vmatprep.subr.mxu0 0.0
        %612 = vmatpush1.msra.mxu0 0.0
        %613 = vmatprep.subr.mxu0 0.0
        %614 = vmatpush1.msra.mxu0 0.0
        %615 = vmatprep.subr.mxu0 0.0
        %616 = vmatpush1.msra.mxu0 0.0
        %617 = vmatprep.subr.mxu0 0.0
        %618 = vmatpush1.msra.mxu0 0.0
        %619 = vmatprep.subr.mxu0 0.0
        %620 = vmatpush1.msra.mxu0 0.0
        %621 = vmatprep.subr.mxu0 0.0
        %622 = vmatpush1.msra.mxu0 0.0
        %623 = vmatprep.subr.mxu0 0.0
        %624 = vmatpush1.msra.mxu0 0.0
        %625 = vmatprep.subr.mxu0 0.0
        %626 = vmatpush1.msra.mxu0 0.0
        %627 = vmatprep.subr.mxu0 0.0
        %628 = vmatpush1.msra.mxu0 0.0
        %629 = vmatprep.subr.mxu0 0.0
        %630 = vmatpush1.msra.mxu0 0.0
        %631 = vmatprep.mubr.f32.mxu0 0.0
        %632 = vmatmul.mubr.f32.gmra.mrb[0].mxu0 %v565
        %v633 = vpop.f32.mrb[0].mxu0
        %v634 = vadd.f32 %v561, %v633
        %v635 = vpop.f32.mrb[0].mxu0
        %636 = vdwg.mxu0
        %v637 = vtanh.pop %v634
        %v638 = vld [vmem:[%s8] sm:$0xff]
        %640 = vset.pattern.permute.xlu0 0
        %641 = vperm.xlu0 %640, %v638
        %v642 = vpop.permute.xlu0 %641
        %v644 = vmul.f32 %v637, %v642
        %v645 = vrot.slane %v644, 4
        %v646 = vadd.f32 %v644, %v645
        %v647 = vrot.slane %v646, 2
        %v648 = vadd.f32 %v646, %v647
        %v649 = vrot.slane %v648, 1
        %v650 = vadd.f32 %v648, %v649
        %v651 = vld [vmem:[#allocation2] sm:$0x1]
        %653 = vset.pattern.permute.xlu0 0
        %654 = vperm.xlu0 %653, %v651
        %v655 = vpop.permute.xlu0 %654
        %v657 = vlaneseq
        %v658 = vshrl.u32 %v657, 7
        %v659 = vsub.s32 0, %v658
        %v660 = vrot.slane %v655, %v659
        %v661 = vadd.f32 %v650, %v660
        %v662 = vsub.f32 0.0, %v661
        %v663 = vmul.f32 %v662, 1.442695
        %v664 = vpow.pop %v663
        %v665 = vadd.f32 %v664, 1.0
        %v666 = vrcp.pop %v665
        %v667 = vmul.f32 1.0, %v666
        %v668 = vmul.f32 %v667, 2.0
        %v669 = vsub.f32 %v668, 1.0
        %v670 = vadd.f32 %v669, %v441
        %v671 = vrcp.pop 0.5
        %v672 = vmul.f32 %v670, %v671
        %v673 = vsub.f32 0.0, %v672
        %v674 = vmul.f32 %v673, 1.442695
        %v675 = vpow.pop %v674
        %v676 = vadd.f32 %v675, 1.0
        %v677 = vrcp.pop %v676
        %v678 = vmul.f32 1.0, %v677
        %v679 = vmul.f32 %v678, %v678
        %v680 = vsub.f32 1.0, %v678
        %v681 = vmul.f32 %v433, %v433
        %v682 = vmul.f32 %v434, %v434
        %v683 = vmul.f32 %v435, %v435
        %v684 = vmul.f32 %v436, %v436
        %685 = vmatprep.subr.mxu0 0.0
        %686 = vmatpush1.msra.mxu0 %v442
        %687 = vmatprep.subr.mxu0 0.0
        %688 = vmatpush1.msra.mxu0 %v443
        %689 = vmatprep.subr.mxu0 0.0
        %690 = vmatpush1.msra.mxu0 %v444
        %691 = vmatprep.subr.mxu0 0.0
        %692 = vmatpush1.msra.mxu0 %v445
        %693 = vmatprep.subr.mxu0 0.0
        %694 = vmatpush1.msra.mxu0 %v446
        %695 = vmatprep.subr.mxu0 0.0
        %696 = vmatpush1.msra.mxu0 %v447
        %697 = vmatprep.subr.mxu0 0.0
        %698 = vmatpush1.msra.mxu0 %v448
        %699 = vmatprep.subr.mxu0 0.0
        %700 = vmatpush1.msra.mxu0 %v449
        %701 = vmatprep.subr.mxu0 0.0
        %702 = vmatpush1.msra.mxu0 %v450
        %703 = vmatprep.subr.mxu0 0.0
        %704 = vmatpush1.msra.mxu0 %v451
        %705 = vmatprep.subr.mxu0 0.0
        %706 = vmatpush1.msra.mxu0 %v452
        %707 = vmatprep.subr.mxu0 0.0
        %708 = vmatpush1.msra.mxu0 %v453
        %709 = vmatprep.subr.mxu0 0.0
        %710 = vmatpush1.msra.mxu0 %v454
        %711 = vmatprep.subr.mxu0 0.0
        %712 = vmatpush1.msra.mxu0 %v455
        %713 = vmatprep.subr.mxu0 0.0
        %714 = vmatpush1.msra.mxu0 %v456
        %715 = vmatprep.subr.mxu0 0.0
        %716 = vmatpush1.msra.mxu0 %v457
        %717 = vmatprep.subr.mxu0 0.0
        %718 = vmatpush1.msra.mxu0 0.0
        %719 = vmatprep.subr.mxu0 0.0
        %720 = vmatpush1.msra.mxu0 0.0
        %721 = vmatprep.subr.mxu0 0.0
        %722 = vmatpush1.msra.mxu0 0.0
        %723 = vmatprep.subr.mxu0 0.0
        %724 = vmatpush1.msra.mxu0 0.0
        %725 = vmatprep.subr.mxu0 0.0
        %726 = vmatpush1.msra.mxu0 0.0
        %727 = vmatprep.subr.mxu0 0.0
        %728 = vmatpush1.msra.mxu0 0.0
        %729 = vmatprep.subr.mxu0 0.0
        %730 = vmatpush1.msra.mxu0 0.0
        %731 = vmatprep.subr.mxu0 0.0
        %732 = vmatpush1.msra.mxu0 0.0
        %733 = vmatprep.subr.mxu0 0.0
        %734 = vmatpush1.msra.mxu0 0.0
        %735 = vmatprep.subr.mxu0 0.0
        %736 = vmatpush1.msra.mxu0 0.0
        %737 = vmatprep.subr.mxu0 0.0
        %738 = vmatpush1.msra.mxu0 0.0
        %739 = vmatprep.subr.mxu0 0.0
        %740 = vmatpush1.msra.mxu0 0.0
        %741 = vmatprep.subr.mxu0 0.0
        %742 = vmatpush1.msra.mxu0 0.0
        %743 = vmatprep.subr.mxu0 0.0
        %744 = vmatpush1.msra.mxu0 0.0
        %745 = vmatprep.subr.mxu0 0.0
        %746 = vmatpush1.msra.mxu0 0.0
        %747 = vmatprep.subr.mxu0 0.0
        %748 = vmatpush1.msra.mxu0 0.0
        %749 = vmatprep.mubr.f32.mxu0 0.0
        %750 = vmatmul.mubr.f32.gmra.mrb[0].mxu0 %v433
        %v751 = vpop.f32.mrb[0].mxu0
        %v752 = vadd.f32 0.0, %v751
        %v753 = vpop.f32.mrb[0].mxu0
        %754 = vmatprep.mubr.f32.mxu0 0.0
        %755 = vmatmul.mubr.f32.gmra.mrb[0].mxu0 %v434
        %v756 = vpop.f32.mrb[0].mxu0
        %v757 = vadd.f32 0.0, %v756
        %v758 = vpop.f32.mrb[0].mxu0
        %759 = vmatprep.mubr.f32.mxu0 0.0
        %760 = vmatmul.mubr.f32.gmra.mrb[0].mxu0 %v435
        %v761 = vpop.f32.mrb[0].mxu0
        %v762 = vadd.f32 0.0, %v761
        %v763 = vpop.f32.mrb[0].mxu0
        %764 = vmatprep.mubr.f32.mxu0 0.0
        %765 = vmatmul.mubr.f32.gmra.mrb[0].mxu0 %v436
        %v766 = vpop.f32.mrb[0].mxu0
        %v767 = vadd.f32 0.0, %v766
        %v768 = vpop.f32.mrb[0].mxu0
        %769 = vdwg.mxu0
        %770 = vmatprep.subr.mxu0 0.0
        %771 = vmatpush1.msra.mxu0 %v442
        %772 = vmatprep.subr.mxu0 0.0
        %773 = vmatpush1.msra.mxu0 %v443
        %774 = vmatprep.subr.mxu0 0.0
        %775 = vmatpush1.msra.mxu0 %v444
        %776 = vmatprep.subr.mxu0 0.0
        %777 = vmatpush1.msra.mxu0 %v445
        %778 = vmatprep.subr.mxu0 0.0
        %779 = vmatpush1.msra.mxu0 %v446
        %780 = vmatprep.subr.mxu0 0.0
        %781 = vmatpush1.msra.mxu0 %v447
        %782 = vmatprep.subr.mxu0 0.0
        %783 = vmatpush1.msra.mxu0 %v448
        %784 = vmatprep.subr.mxu0 0.0
        %785 = vmatpush1.msra.mxu0 %v449
        %786 = vmatprep.subr.mxu0 0.0
        %787 = vmatpush1.msra.mxu0 %v450
        %788 = vmatprep.subr.mxu0 0.0
        %789 = vmatpush1.msra.mxu0 %v451
        %790 = vmatprep.subr.mxu0 0.0
        %791 = vmatpush1.msra.mxu0 %v452
        %792 = vmatprep.subr.mxu0 0.0
        %793 = vmatpush1.msra.mxu0 %v453
        %794 = vmatprep.subr.mxu0 0.0
        %795 = vmatpush1.msra.mxu0 %v454
        %796 = vmatprep.subr.mxu0 0.0
        %797 = vmatpush1.msra.mxu0 %v455
        %798 = vmatprep.subr.mxu0 0.0
        %799 = vmatpush1.msra.mxu0 %v456
        %800 = vmatprep.subr.mxu0 0.0
        %801 = vmatpush1.msra.mxu0 %v457
        %802 = vmatprep.subr.mxu0 0.0
        %803 = vmatpush1.msra.mxu0 0.0
        %804 = vmatprep.subr.mxu0 0.0
        %805 = vmatpush1.msra.mxu0 0.0
        %806 = vmatprep.subr.mxu0 0.0
        %807 = vmatpush1.msra.mxu0 0.0
        %808 = vmatprep.subr.mxu0 0.0
        %809 = vmatpush1.msra.mxu0 0.0
        %810 = vmatprep.subr.mxu0 0.0
        %811 = vmatpush1.msra.mxu0 0.0
        %812 = vmatprep.subr.mxu0 0.0
        %813 = vmatpush1.msra.mxu0 0.0
        %814 = vmatprep.subr.mxu0 0.0
        %815 = vmatpush1.msra.mxu0 0.0
        %816 = vmatprep.subr.mxu0 0.0
        %817 = vmatpush1.msra.mxu0 0.0
        %818 = vmatprep.subr.mxu0 0.0
        %819 = vmatpush1.msra.mxu0 0.0
        %820 = vmatprep.subr.mxu0 0.0
        %821 = vmatpush1.msra.mxu0 0.0
        %822 = vmatprep.subr.mxu0 0.0
        %823 = vmatpush1.msra.mxu0 0.0
        %824 = vmatprep.subr.mxu0 0.0
        %825 = vmatpush1.msra.mxu0 0.0
        %826 = vmatprep.subr.mxu0 0.0
        %827 = vmatpush1.msra.mxu0 0.0
        %828 = vmatprep.subr.mxu0 0.0
        %829 = vmatpush1.msra.mxu0 0.0
        %830 = vmatprep.subr.mxu0 0.0
        %831 = vmatpush1.msra.mxu0 0.0
        %832 = vmatprep.subr.mxu0 0.0
        %833 = vmatpush1.msra.mxu0 0.0
        %834 = vmatprep.mubr.f32.mxu0 0.0
        %835 = vmatmul.mubr.f32.gmra.mrb[0].mxu0 %v681
        %v836 = vpop.f32.mrb[0].mxu0
        %v837 = vadd.f32 0.0, %v836
        %v838 = vpop.f32.mrb[0].mxu0
        %839 = vmatprep.mubr.f32.mxu0 0.0
        %840 = vmatmul.mubr.f32.gmra.mrb[0].mxu0 %v682
        %v841 = vpop.f32.mrb[0].mxu0
        %v842 = vadd.f32 0.0, %v841
        %v843 = vpop.f32.mrb[0].mxu0
        %844 = vmatprep.mubr.f32.mxu0 0.0
        %845 = vmatmul.mubr.f32.gmra.mrb[0].mxu0 %v683
        %v846 = vpop.f32.mrb[0].mxu0
        %v847 = vadd.f32 0.0, %v846
        %v848 = vpop.f32.mrb[0].mxu0
        %849 = vmatprep.mubr.f32.mxu0 0.0
        %850 = vmatmul.mubr.f32.gmra.mrb[0].mxu0 %v684
        %v851 = vpop.f32.mrb[0].mxu0
        %v852 = vadd.f32 0.0, %v851
        %v853 = vpop.f32.mrb[0].mxu0
        %854 = vdwg.mxu0
        %v855 = vlaneseq
        %v856 = vshrl.u32 %v855, 7
        %v857 = vsub.s32 0, %v856
        %v858 = vrot.slane %v678, %v857
        %v859 = vmul.f32 %v433, %v858
        %v860 = vmul.f32 %v434, %v858
        %v861 = vmul.f32 %v435, %v858
        %v862 = vmul.f32 %v436, %v858
        %863 = vmatprep.subr.mxu0 0.0
        %864 = vmatpush1.msra.mxu0 %v442
        %865 = vmatprep.subr.mxu0 0.0
        %866 = vmatpush1.msra.mxu0 %v443
        %867 = vmatprep.subr.mxu0 0.0
        %868 = vmatpush1.msra.mxu0 %v444
        %869 = vmatprep.subr.mxu0 0.0
        %870 = vmatpush1.msra.mxu0 %v445
        %871 = vmatprep.subr.mxu0 0.0
        %872 = vmatpush1.msra.mxu0 %v446
        %873 = vmatprep.subr.mxu0 0.0
        %874 = vmatpush1.msra.mxu0 %v447
        %875 = vmatprep.subr.mxu0 0.0
        %876 = vmatpush1.msra.mxu0 %v448
        %877 = vmatprep.subr.mxu0 0.0
        %878 = vmatpush1.msra.mxu0 %v449
        %879 = vmatprep.subr.mxu0 0.0
        %880 = vmatpush1.msra.mxu0 %v450
        %881 = vmatprep.subr.mxu0 0.0
        %882 = vmatpush1.msra.mxu0 %v451
        %883 = vmatprep.subr.mxu0 0.0
        %884 = vmatpush1.msra.mxu0 %v452
        %885 = vmatprep.subr.mxu0 0.0
        %886 = vmatpush1.msra.mxu0 %v453
        %887 = vmatprep.subr.mxu0 0.0
        %888 = vmatpush1.msra.mxu0 %v454
        %889 = vmatprep.subr.mxu0 0.0
        %890 = vmatpush1.msra.mxu0 %v455
        %891 = vmatprep.subr.mxu0 0.0
        %892 = vmatpush1.msra.mxu0 %v456
        %893 = vmatprep.subr.mxu0 0.0
        %894 = vmatpush1.msra.mxu0 %v457
        %895 = vmatprep.subr.mxu0 0.0
        %896 = vmatpush1.msra.mxu0 0.0
        %897 = vmatprep.subr.mxu0 0.0
        %898 = vmatpush1.msra.mxu0 0.0
        %899 = vmatprep.subr.mxu0 0.0
        %900 = vmatpush1.msra.mxu0 0.0
        %901 = vmatprep.subr.mxu0 0.0
        %902 = vmatpush1.msra.mxu0 0.0
        %903 = vmatprep.subr.mxu0 0.0
        %904 = vmatpush1.msra.mxu0 0.0
        %905 = vmatprep.subr.mxu0 0.0
        %906 = vmatpush1.msra.mxu0 0.0
        %907 = vmatprep.subr.mxu0 0.0
        %908 = vmatpush1.msra.mxu0 0.0
        %909 = vmatprep.subr.mxu0 0.0
        %910 = vmatpush1.msra.mxu0 0.0
        %911 = vmatprep.subr.mxu0 0.0
        %912 = vmatpush1.msra.mxu0 0.0
        %913 = vmatprep.subr.mxu0 0.0
        %914 = vmatpush1.msra.mxu0 0.0
        %915 = vmatprep.subr.mxu0 0.0
        %916 = vmatpush1.msra.mxu0 0.0
        %917 = vmatprep.subr.mxu0 0.0
        %918 = vmatpush1.msra.mxu0 0.0
        %919 = vmatprep.subr.mxu0 0.0
        %920 = vmatpush1.msra.mxu0 0.0
        %921 = vmatprep.subr.mxu0 0.0
        %922 = vmatpush1.msra.mxu0 0.0
        %923 = vmatprep.subr.mxu0 0.0
        %924 = vmatpush1.msra.mxu0 0.0
        %925 = vmatprep.subr.mxu0 0.0
        %926 = vmatpush1.msra.mxu0 0.0
        %927 = vmatprep.mubr.f32.mxu0 0.0
        %928 = vmatmul.mubr.f32.gmra.mrb[0].mxu0 %v859
        %v929 = vpop.f32.mrb[0].mxu0
        %v930 = vadd.f32 0.0, %v929
        %v931 = vpop.f32.mrb[0].mxu0
        %932 = vmatprep.mubr.f32.mxu0 0.0
        %933 = vmatmul.mubr.f32.gmra.mrb[0].mxu0 %v860
        %v934 = vpop.f32.mrb[0].mxu0
        %v935 = vadd.f32 0.0, %v934
        %v936 = vpop.f32.mrb[0].mxu0
        %937 = vmatprep.mubr.f32.mxu0 0.0
        %938 = vmatmul.mubr.f32.gmra.mrb[0].mxu0 %v861
        %v939 = vpop.f32.mrb[0].mxu0
        %v940 = vadd.f32 0.0, %v939
        %v941 = vpop.f32.mrb[0].mxu0
        %942 = vmatprep.mubr.f32.mxu0 0.0
        %943 = vmatmul.mubr.f32.gmra.mrb[0].mxu0 %v862
        %v944 = vpop.f32.mrb[0].mxu0
        %v945 = vadd.f32 0.0, %v944
        %v946 = vpop.f32.mrb[0].mxu0
        %947 = vdwg.mxu0
        %v948 = vlaneseq
        %v949 = vshrl.u32 %v948, 7
        %v950 = vsub.s32 0, %v949
        %v951 = vrot.slane %v680, %v950
        %v952 = vmul.f32 %v437, %v951
        %v953 = vmul.f32 %v438, %v951
        %v954 = vmul.f32 %v439, %v951
        %v955 = vmul.f32 %v440, %v951
        %956 = vmatprep.subr.mxu0 0.0
        %957 = vmatpush1.msra.mxu0 %v442
        %958 = vmatprep.subr.mxu0 0.0
        %959 = vmatpush1.msra.mxu0 %v443
        %960 = vmatprep.subr.mxu0 0.0
        %961 = vmatpush1.msra.mxu0 %v444
        %962 = vmatprep.subr.mxu0 0.0
        %963 = vmatpush1.msra.mxu0 %v445
        %964 = vmatprep.subr.mxu0 0.0
        %965 = vmatpush1.msra.mxu0 %v446
        %966 = vmatprep.subr.mxu0 0.0
        %967 = vmatpush1.msra.mxu0 %v447
        %968 = vmatprep.subr.mxu0 0.0
        %969 = vmatpush1.msra.mxu0 %v448
        %970 = vmatprep.subr.mxu0 0.0
        %971 = vmatpush1.msra.mxu0 %v449
        %972 = vmatprep.subr.mxu0 0.0
        %973 = vmatpush1.msra.mxu0 %v450
        %974 = vmatprep.subr.mxu0 0.0
        %975 = vmatpush1.msra.mxu0 %v451
        %976 = vmatprep.subr.mxu0 0.0
        %977 = vmatpush1.msra.mxu0 %v452
        %978 = vmatprep.subr.mxu0 0.0
        %979 = vmatpush1.msra.mxu0 %v453
        %980 = vmatprep.subr.mxu0 0.0
        %981 = vmatpush1.msra.mxu0 %v454
        %982 = vmatprep.subr.mxu0 0.0
        %983 = vmatpush1.msra.mxu0 %v455
        %984 = vmatprep.subr.mxu0 0.0
        %985 = vmatpush1.msra.mxu0 %v456
        %986 = vmatprep.subr.mxu0 0.0
        %987 = vmatpush1.msra.mxu0 %v457
        %988 = vmatprep.subr.mxu0 0.0
        %989 = vmatpush1.msra.mxu0 0.0
        %990 = vmatprep.subr.mxu0 0.0
        %991 = vmatpush1.msra.mxu0 0.0
        %992 = vmatprep.subr.mxu0 0.0
        %993 = vmatpush1.msra.mxu0 0.0
        %994 = vmatprep.subr.mxu0 0.0
        %995 = vmatpush1.msra.mxu0 0.0
        %996 = vmatprep.subr.mxu0 0.0
        %997 = vmatpush1.msra.mxu0 0.0
        %998 = vmatprep.subr.mxu0 0.0
        %999 = vmatpush1.msra.mxu0 0.0
        %1000 = vmatprep.subr.mxu0 0.0
        %1001 = vmatpush1.msra.mxu0 0.0
        %1002 = vmatprep.subr.mxu0 0.0
        %1003 = vmatpush1.msra.mxu0 0.0
        %1004 = vmatprep.subr.mxu0 0.0
        %1005 = vmatpush1.msra.mxu0 0.0
        %1006 = vmatprep.subr.mxu0 0.0
        %1007 = vmatpush1.msra.mxu0 0.0
        %1008 = vmatprep.subr.mxu0 0.0
        %1009 = vmatpush1.msra.mxu0 0.0
        %1010 = vmatprep.subr.mxu0 0.0
        %1011 = vmatpush1.msra.mxu0 0.0
        %1012 = vmatprep.subr.mxu0 0.0
        %1013 = vmatpush1.msra.mxu0 0.0
        %1014 = vmatprep.subr.mxu0 0.0
        %1015 = vmatpush1.msra.mxu0 0.0
        %1016 = vmatprep.subr.mxu0 0.0
        %1017 = vmatpush1.msra.mxu0 0.0
        %1018 = vmatprep.subr.mxu0 0.0
        %1019 = vmatpush1.msra.mxu0 0.0
        %1020 = vmatprep.mubr.f32.mxu0 0.0
        %1021 = vmatmul.mubr.f32.gmra.mrb[0].mxu0 %v952
        %v1022 = vpop.f32.mrb[0].mxu0
        %v1023 = vadd.f32 0.0, %v1022
        %v1024 = vpop.f32.mrb[0].mxu0
        %1025 = vmatprep.mubr.f32.mxu0 0.0
        %1026 = vmatmul.mubr.f32.gmra.mrb[0].mxu0 %v953
        %v1027 = vpop.f32.mrb[0].mxu0
        %v1028 = vadd.f32 0.0, %v1027
        %v1029 = vpop.f32.mrb[0].mxu0
        %1030 = vmatprep.mubr.f32.mxu0 0.0
        %1031 = vmatmul.mubr.f32.gmra.mrb[0].mxu0 %v954
        %v1032 = vpop.f32.mrb[0].mxu0
        %v1033 = vadd.f32 0.0, %v1032
        %v1034 = vpop.f32.mrb[0].mxu0
        %1035 = vmatprep.mubr.f32.mxu0 0.0
        %1036 = vmatmul.mubr.f32.gmra.mrb[0].mxu0 %v955
        %v1037 = vpop.f32.mrb[0].mxu0
        %v1038 = vadd.f32 0.0, %v1037
        %v1039 = vpop.f32.mrb[0].mxu0
        %1040 = vdwg.mxu0
        %v1041 = vlaneseq
        %v1042 = vshrl.u32 %v1041, 7
        %v1043 = vsub.s32 0, %v1042
        %v1044 = vrot.slane %v679, %v1043
        %v1045 = vmul.f32 %v433, %v1044
        %v1046 = vmul.f32 %v434, %v1044
        %v1047 = vmul.f32 %v435, %v1044
        %v1048 = vmul.f32 %v436, %v1044
        %1049 = vmatprep.subr.mxu0 0.0
        %1050 = vmatpush1.msra.mxu0 %v442
        %1051 = vmatprep.subr.mxu0 0.0
        %1052 = vmatpush1.msra.mxu0 %v443
        %1053 = vmatprep.subr.mxu0 0.0
        %1054 = vmatpush1.msra.mxu0 %v444
        %1055 = vmatprep.subr.mxu0 0.0
        %1056 = vmatpush1.msra.mxu0 %v445
        %1057 = vmatprep.subr.mxu0 0.0
        %1058 = vmatpush1.msra.mxu0 %v446
        %1059 = vmatprep.subr.mxu0 0.0
        %1060 = vmatpush1.msra.mxu0 %v447
        %1061 = vmatprep.subr.mxu0 0.0
        %1062 = vmatpush1.msra.mxu0 %v448
        %1063 = vmatprep.subr.mxu0 0.0
        %1064 = vmatpush1.msra.mxu0 %v449
        %1065 = vmatprep.subr.mxu0 0.0
        %1066 = vmatpush1.msra.mxu0 %v450
        %1067 = vmatprep.subr.mxu0 0.0
        %1068 = vmatpush1.msra.mxu0 %v451
        %1069 = vmatprep.subr.mxu0 0.0
        %1070 = vmatpush1.msra.mxu0 %v452
        %1071 = vmatprep.subr.mxu0 0.0
        %1072 = vmatpush1.msra.mxu0 %v453
        %1073 = vmatprep.subr.mxu0 0.0
        %1074 = vmatpush1.msra.mxu0 %v454
        %1075 = vmatprep.subr.mxu0 0.0
        %1076 = vmatpush1.msra.mxu0 %v455
        %1077 = vmatprep.subr.mxu0 0.0
        %1078 = vmatpush1.msra.mxu0 %v456
        %1079 = vmatprep.subr.mxu0 0.0
        %1080 = vmatpush1.msra.mxu0 %v457
        %1081 = vmatprep.subr.mxu0 0.0
        %1082 = vmatpush1.msra.mxu0 0.0
        %1083 = vmatprep.subr.mxu0 0.0
        %1084 = vmatpush1.msra.mxu0 0.0
        %1085 = vmatprep.subr.mxu0 0.0
        %1086 = vmatpush1.msra.mxu0 0.0
        %1087 = vmatprep.subr.mxu0 0.0
        %1088 = vmatpush1.msra.mxu0 0.0
        %1089 = vmatprep.subr.mxu0 0.0
        %1090 = vmatpush1.msra.mxu0 0.0
        %1091 = vmatprep.subr.mxu0 0.0
        %1092 = vmatpush1.msra.mxu0 0.0
        %1093 = vmatprep.subr.mxu0 0.0
        %1094 = vmatpush1.msra.mxu0 0.0
        %1095 = vmatprep.subr.mxu0 0.0
        %1096 = vmatpush1.msra.mxu0 0.0
        %1097 = vmatprep.subr.mxu0 0.0
        %1098 = vmatpush1.msra.mxu0 0.0
        %1099 = vmatprep.subr.mxu0 0.0
        %1100 = vmatpush1.msra.mxu0 0.0
        %1101 = vmatprep.subr.mxu0 0.0
        %1102 = vmatpush1.msra.mxu0 0.0
        %1103 = vmatprep.subr.mxu0 0.0
        %1104 = vmatpush1.msra.mxu0 0.0
        %1105 = vmatprep.subr.mxu0 0.0
        %1106 = vmatpush1.msra.mxu0 0.0
        %1107 = vmatprep.subr.mxu0 0.0
        %1108 = vmatpush1.msra.mxu0 0.0
        %1109 = vmatprep.subr.mxu0 0.0
        %1110 = vmatpush1.msra.mxu0 0.0
        %1111 = vmatprep.subr.mxu0 0.0
        %1112 = vmatpush1.msra.mxu0 0.0
        %1113 = vmatprep.mubr.f32.mxu0 0.0
        %1114 = vmatmul.mubr.f32.gmra.mrb[0].mxu0 %v1045
        %v1115 = vpop.f32.mrb[0].mxu0
        %v1116 = vadd.f32 0.0, %v1115
        %v1117 = vpop.f32.mrb[0].mxu0
        %1118 = vmatprep.mubr.f32.mxu0 0.0
        %1119 = vmatmul.mubr.f32.gmra.mrb[0].mxu0 %v1046
        %v1120 = vpop.f32.mrb[0].mxu0
        %v1121 = vadd.f32 0.0, %v1120
        %v1122 = vpop.f32.mrb[0].mxu0
        %1123 = vmatprep.mubr.f32.mxu0 0.0
        %1124 = vmatmul.mubr.f32.gmra.mrb[0].mxu0 %v1047
        %v1125 = vpop.f32.mrb[0].mxu0
        %v1126 = vadd.f32 0.0, %v1125
        %v1127 = vpop.f32.mrb[0].mxu0
        %1128 = vmatprep.mubr.f32.mxu0 0.0
        %1129 = vmatmul.mubr.f32.gmra.mrb[0].mxu0 %v1048
        %v1130 = vpop.f32.mrb[0].mxu0
        %v1131 = vadd.f32 0.0, %v1130
        %v1132 = vpop.f32.mrb[0].mxu0
        %1133 = vdwg.mxu0
        %v1134 = vmul.f32 %v681, %v1044
        %v1135 = vmul.f32 %v682, %v1044
        %v1136 = vmul.f32 %v683, %v1044
        %v1137 = vmul.f32 %v684, %v1044
        %1138 = vmatprep.subr.mxu0 0.0
        %1139 = vmatpush1.msra.mxu0 %v442
        %1140 = vmatprep.subr.mxu0 0.0
        %1141 = vmatpush1.msra.mxu0 %v443
        %1142 = vmatprep.subr.mxu0 0.0
        %1143 = vmatpush1.msra.mxu0 %v444
        %1144 = vmatprep.subr.mxu0 0.0
        %1145 = vmatpush1.msra.mxu0 %v445
        %1146 = vmatprep.subr.mxu0 0.0
        %1147 = vmatpush1.msra.mxu0 %v446
        %1148 = vmatprep.subr.mxu0 0.0
        %1149 = vmatpush1.msra.mxu0 %v447
        %1150 = vmatprep.subr.mxu0 0.0
        %1151 = vmatpush1.msra.mxu0 %v448
        %1152 = vmatprep.subr.mxu0 0.0
        %1153 = vmatpush1.msra.mxu0 %v449
        %1154 = vmatprep.subr.mxu0 0.0
        %1155 = vmatpush1.msra.mxu0 %v450
        %1156 = vmatprep.subr.mxu0 0.0
        %1157 = vmatpush1.msra.mxu0 %v451
        %1158 = vmatprep.subr.mxu0 0.0
        %1159 = vmatpush1.msra.mxu0 %v452
        %1160 = vmatprep.subr.mxu0 0.0
        %1161 = vmatpush1.msra.mxu0 %v453
        %1162 = vmatprep.subr.mxu0 0.0
        %1163 = vmatpush1.msra.mxu0 %v454
        %1164 = vmatprep.subr.mxu0 0.0
        %1165 = vmatpush1.msra.mxu0 %v455
        %1166 = vmatprep.subr.mxu0 0.0
        %1167 = vmatpush1.msra.mxu0 %v456
        %1168 = vmatprep.subr.mxu0 0.0
        %1169 = vmatpush1.msra.mxu0 %v457
        %1170 = vmatprep.subr.mxu0 0.0
        %1171 = vmatpush1.msra.mxu0 0.0
        %1172 = vmatprep.subr.mxu0 0.0
        %1173 = vmatpush1.msra.mxu0 0.0
        %1174 = vmatprep.subr.mxu0 0.0
        %1175 = vmatpush1.msra.mxu0 0.0
        %1176 = vmatprep.subr.mxu0 0.0
        %1177 = vmatpush1.msra.mxu0 0.0
        %1178 = vmatprep.subr.mxu0 0.0
        %1179 = vmatpush1.msra.mxu0 0.0
        %1180 = vmatprep.subr.mxu0 0.0
        %1181 = vmatpush1.msra.mxu0 0.0
        %1182 = vmatprep.subr.mxu0 0.0
        %1183 = vmatpush1.msra.mxu0 0.0
        %1184 = vmatprep.subr.mxu0 0.0
        %1185 = vmatpush1.msra.mxu0 0.0
        %1186 = vmatprep.subr.mxu0 0.0
        %1187 = vmatpush1.msra.mxu0 0.0
        %1188 = vmatprep.subr.mxu0 0.0
        %1189 = vmatpush1.msra.mxu0 0.0
        %1190 = vmatprep.subr.mxu0 0.0
        %1191 = vmatpush1.msra.mxu0 0.0
        %1192 = vmatprep.subr.mxu0 0.0
        %1193 = vmatpush1.msra.mxu0 0.0
        %1194 = vmatprep.subr.mxu0 0.0
        %1195 = vmatpush1.msra.mxu0 0.0
        %1196 = vmatprep.subr.mxu0 0.0
        %1197 = vmatpush1.msra.mxu0 0.0
        %1198 = vmatprep.subr.mxu0 0.0
        %1199 = vmatpush1.msra.mxu0 0.0
        %1200 = vmatprep.subr.mxu0 0.0
        %1201 = vmatpush1.msra.mxu0 0.0
        %1202 = vmatprep.mubr.f32.mxu0 0.0
        %1203 = vmatmul.mubr.f32.gmra.mrb[0].mxu0 %v1134
        %v1204 = vpop.f32.mrb[0].mxu0
        %v1205 = vadd.f32 0.0, %v1204
        %v1206 = vpop.f32.mrb[0].mxu0
        %1207 = vmatprep.mubr.f32.mxu0 0.0
        %1208 = vmatmul.mubr.f32.gmra.mrb[0].mxu0 %v1135
        %v1209 = vpop.f32.mrb[0].mxu0
        %v1210 = vadd.f32 0.0, %v1209
        %v1211 = vpop.f32.mrb[0].mxu0
        %1212 = vmatprep.mubr.f32.mxu0 0.0
        %1213 = vmatmul.mubr.f32.gmra.mrb[0].mxu0 %v1136
        %v1214 = vpop.f32.mrb[0].mxu0
        %v1215 = vadd.f32 0.0, %v1214
        %v1216 = vpop.f32.mrb[0].mxu0
        %1217 = vmatprep.mubr.f32.mxu0 0.0
        %1218 = vmatmul.mubr.f32.gmra.mrb[0].mxu0 %v1137
        %v1219 = vpop.f32.mrb[0].mxu0
        %v1220 = vadd.f32 0.0, %v1219
        %v1221 = vpop.f32.mrb[0].mxu0
        %1222 = vdwg.mxu0
        %1223 = vmatprep.subr.mxu0 0.0
        %1224 = vmatpush1.msra.mxu0 %v442
        %1225 = vmatprep.subr.mxu0 0.0
        %1226 = vmatpush1.msra.mxu0 %v443
        %1227 = vmatprep.subr.mxu0 0.0
        %1228 = vmatpush1.msra.mxu0 %v444
        %1229 = vmatprep.subr.mxu0 0.0
        %1230 = vmatpush1.msra.mxu0 %v445
        %1231 = vmatprep.subr.mxu0 0.0
        %1232 = vmatpush1.msra.mxu0 %v446
        %1233 = vmatprep.subr.mxu0 0.0
        %1234 = vmatpush1.msra.mxu0 %v447
        %1235 = vmatprep.subr.mxu0 0.0
        %1236 = vmatpush1.msra.mxu0 %v448
        %1237 = vmatprep.subr.mxu0 0.0
        %1238 = vmatpush1.msra.mxu0 %v449
        %1239 = vmatprep.subr.mxu0 0.0
        %1240 = vmatpush1.msra.mxu0 %v450
        %1241 = vmatprep.subr.mxu0 0.0
        %1242 = vmatpush1.msra.mxu0 %v451
        %1243 = vmatprep.subr.mxu0 0.0
        %1244 = vmatpush1.msra.mxu0 %v452
        %1245 = vmatprep.subr.mxu0 0.0
        %1246 = vmatpush1.msra.mxu0 %v453
        %1247 = vmatprep.subr.mxu0 0.0
        %1248 = vmatpush1.msra.mxu0 %v454
        %1249 = vmatprep.subr.mxu0 0.0
        %1250 = vmatpush1.msra.mxu0 %v455
        %1251 = vmatprep.subr.mxu0 0.0
        %1252 = vmatpush1.msra.mxu0 %v456
        %1253 = vmatprep.subr.mxu0 0.0
        %1254 = vmatpush1.msra.mxu0 %v457
        %1255 = vmatprep.subr.mxu0 0.0
        %1256 = vmatpush1.msra.mxu0 0.0
        %1257 = vmatprep.subr.mxu0 0.0
        %1258 = vmatpush1.msra.mxu0 0.0
        %1259 = vmatprep.subr.mxu0 0.0
        %1260 = vmatpush1.msra.mxu0 0.0
        %1261 = vmatprep.subr.mxu0 0.0
        %1262 = vmatpush1.msra.mxu0 0.0
        %1263 = vmatprep.subr.mxu0 0.0
        %1264 = vmatpush1.msra.mxu0 0.0
        %1265 = vmatprep.subr.mxu0 0.0
        %1266 = vmatpush1.msra.mxu0 0.0
        %1267 = vmatprep.subr.mxu0 0.0
        %1268 = vmatpush1.msra.mxu0 0.0
        %1269 = vmatprep.subr.mxu0 0.0
        %1270 = vmatpush1.msra.mxu0 0.0
        %1271 = vmatprep.subr.mxu0 0.0
        %1272 = vmatpush1.msra.mxu0 0.0
        %1273 = vmatprep.subr.mxu0 0.0
        %1274 = vmatpush1.msra.mxu0 0.0
        %1275 = vmatprep.subr.mxu0 0.0
        %1276 = vmatpush1.msra.mxu0 0.0
        %1277 = vmatprep.subr.mxu0 0.0
        %1278 = vmatpush1.msra.mxu0 0.0
        %1279 = vmatprep.subr.mxu0 0.0
        %1280 = vmatpush1.msra.mxu0 0.0
        %1281 = vmatprep.subr.mxu0 0.0
        %1282 = vmatpush1.msra.mxu0 0.0
        %1283 = vmatprep.subr.mxu0 0.0
        %1284 = vmatpush1.msra.mxu0 0.0
        %1285 = vmatprep.subr.mxu0 0.0
        %1286 = vmatpush1.msra.mxu0 0.0
        %1287 = vmatprep.mubr.f32.mxu0 0.0
        %1288 = vmatmul.mubr.f32.gmra.mrb[0].mxu0 %v678
        %v1289 = vpop.f32.mrb[0].mxu0
        %v1290 = vadd.f32 0.0, %v1289
        %v1291 = vpop.f32.mrb[0].mxu0
        %1292 = vdwg.mxu0
        %1293 = vmatprep.subr.mxu0 0.0
        %1294 = vmatpush1.msra.mxu0 %v442
        %1295 = vmatprep.subr.mxu0 0.0
        %1296 = vmatpush1.msra.mxu0 %v443
        %1297 = vmatprep.subr.mxu0 0.0
        %1298 = vmatpush1.msra.mxu0 %v444
        %1299 = vmatprep.subr.mxu0 0.0
        %1300 = vmatpush1.msra.mxu0 %v445
        %1301 = vmatprep.subr.mxu0 0.0
        %1302 = vmatpush1.msra.mxu0 %v446
        %1303 = vmatprep.subr.mxu0 0.0
        %1304 = vmatpush1.msra.mxu0 %v447
        %1305 = vmatprep.subr.mxu0 0.0
        %1306 = vmatpush1.msra.mxu0 %v448
        %1307 = vmatprep.subr.mxu0 0.0
        %1308 = vmatpush1.msra.mxu0 %v449
        %1309 = vmatprep.subr.mxu0 0.0
        %1310 = vmatpush1.msra.mxu0 %v450
        %1311 = vmatprep.subr.mxu0 0.0
        %1312 = vmatpush1.msra.mxu0 %v451
        %1313 = vmatprep.subr.mxu0 0.0
        %1314 = vmatpush1.msra.mxu0 %v452
        %1315 = vmatprep.subr.mxu0 0.0
        %1316 = vmatpush1.msra.mxu0 %v453
        %1317 = vmatprep.subr.mxu0 0.0
        %1318 = vmatpush1.msra.mxu0 %v454
        %1319 = vmatprep.subr.mxu0 0.0
        %1320 = vmatpush1.msra.mxu0 %v455
        %1321 = vmatprep.subr.mxu0 0.0
        %1322 = vmatpush1.msra.mxu0 %v456
        %1323 = vmatprep.subr.mxu0 0.0
        %1324 = vmatpush1.msra.mxu0 %v457
        %1325 = vmatprep.subr.mxu0 0.0
        %1326 = vmatpush1.msra.mxu0 0.0
        %1327 = vmatprep.subr.mxu0 0.0
        %1328 = vmatpush1.msra.mxu0 0.0
        %1329 = vmatprep.subr.mxu0 0.0
        %1330 = vmatpush1.msra.mxu0 0.0
        %1331 = vmatprep.subr.mxu0 0.0
        %1332 = vmatpush1.msra.mxu0 0.0
        %1333 = vmatprep.subr.mxu0 0.0
        %1334 = vmatpush1.msra.mxu0 0.0
        %1335 = vmatprep.subr.mxu0 0.0
        %1336 = vmatpush1.msra.mxu0 0.0
        %1337 = vmatprep.subr.mxu0 0.0
        %1338 = vmatpush1.msra.mxu0 0.0
        %1339 = vmatprep.subr.mxu0 0.0
        %1340 = vmatpush1.msra.mxu0 0.0
        %1341 = vmatprep.subr.mxu0 0.0
        %1342 = vmatpush1.msra.mxu0 0.0
        %1343 = vmatprep.subr.mxu0 0.0
        %1344 = vmatpush1.msra.mxu0 0.0
        %1345 = vmatprep.subr.mxu0 0.0
        %1346 = vmatpush1.msra.mxu0 0.0
        %1347 = vmatprep.subr.mxu0 0.0
        %1348 = vmatpush1.msra.mxu0 0.0
        %1349 = vmatprep.subr.mxu0 0.0
        %1350 = vmatpush1.msra.mxu0 0.0
        %1351 = vmatprep.subr.mxu0 0.0
        %1352 = vmatpush1.msra.mxu0 0.0
        %1353 = vmatprep.subr.mxu0 0.0
        %1354 = vmatpush1.msra.mxu0 0.0
        %1355 = vmatprep.subr.mxu0 0.0
        %1356 = vmatpush1.msra.mxu0 0.0
        %1357 = vmatprep.mubr.f32.mxu0 0.0
        %1358 = vmatmul.mubr.f32.gmra.mrb[0].mxu0 %v679
        %v1359 = vpop.f32.mrb[0].mxu0
        %v1360 = vadd.f32 0.0, %v1359
        %v1361 = vpop.f32.mrb[0].mxu0
        %1362 = vdwg.mxu0
        %v1363 = vmul.f32 %v1290, 2.0
        %v1364 = vsub.f32 8.0, %v1363
        %v1365 = vadd.f32 %v1364, %v1360
        %v1366 = vrcp.pop 8.0
        %v1367 = vmul.f32 %v752, %v1366
        %v1368 = vmul.f32 %v757, %v1366
        %v1369 = vmul.f32 %v762, %v1366
        %v1370 = vmul.f32 %v767, %v1366
        %v1371 = vmul.f32 %v1367, %v752
        %v1372 = vmul.f32 %v1368, %v757
        %v1373 = vmul.f32 %v1369, %v762
        %v1374 = vmul.f32 %v1370, %v767
        %v1375 = vsub.f32 %v837, %v1371
        %v1376 = vsub.f32 %v842, %v1372
        %v1377 = vsub.f32 %v847, %v1373
        %v1378 = vsub.f32 %v852, %v1374
        %v1379 = vmax.f32 %v1375, 0.0
        %v1380 = vmax.f32 %v1376, 0.0
        %v1381 = vmax.f32 %v1377, 0.0
        %v1382 = vmax.f32 %v1378, 0.0
        %v1383 = vrcp.pop 7.0
        %v1384 = vmul.f32 %v1379, %v1383
        %v1385 = vmul.f32 %v1380, %v1383
        %v1386 = vmul.f32 %v1381, %v1383
        %v1387 = vmul.f32 %v1382, %v1383
        %v1388 = vrsqrt.pop %v1384
        %v1389 = vmul.f32 %v1384, %v1388
        %vm1390 = vcmp.eq.f32.partialorder %v1384, inf
        %v1391 = vsel %vm1390, %v1384, %v1389
        %vm1392 = vcmp.eq.f32.partialorder %v1384, 0.0
        %v1393 = vand.u32 %v1384, 2147483648
        %v1394 = vsel %vm1392, %v1393, %v1391
        %v1395 = vrsqrt.pop %v1385
        %v1396 = vmul.f32 %v1385, %v1395
        %vm1397 = vcmp.eq.f32.partialorder %v1385, inf
        %v1398 = vsel %vm1397, %v1385, %v1396
        %vm1399 = vcmp.eq.f32.partialorder %v1385, 0.0
        %v1400 = vand.u32 %v1385, 2147483648
        %v1401 = vsel %vm1399, %v1400, %v1398
        %v1402 = vrsqrt.pop %v1386
        %v1403 = vmul.f32 %v1386, %v1402
        %vm1404 = vcmp.eq.f32.partialorder %v1386, inf
        %v1405 = vsel %vm1404, %v1386, %v1403
        %vm1406 = vcmp.eq.f32.partialorder %v1386, 0.0
        %v1407 = vand.u32 %v1386, 2147483648
        %v1408 = vsel %vm1406, %v1407, %v1405
        %v1409 = vrsqrt.pop %v1387
        %v1410 = vmul.f32 %v1387, %v1409
        %vm1411 = vcmp.eq.f32.partialorder %v1387, inf
        %v1412 = vsel %vm1411, %v1387, %v1410
        %vm1413 = vcmp.eq.f32.partialorder %v1387, 0.0
        %v1414 = vand.u32 %v1387, 2147483648
        %v1415 = vsel %vm1413, %v1414, %v1412
        %v1416 = vadd.f32 %v1394, 1e-07
        %v1417 = vadd.f32 %v1401, 1e-07
        %v1418 = vadd.f32 %v1408, 1e-07
        %v1419 = vadd.f32 %v1415, 1e-07
        %v1420 = vrcp.pop %v1416
        %v1421 = vmul.f32 1.0, %v1420
        %v1422 = vrcp.pop %v1417
        %v1423 = vmul.f32 1.0, %v1422
        %v1424 = vrcp.pop %v1418
        %v1425 = vmul.f32 1.0, %v1424
        %v1426 = vrcp.pop %v1419
        %v1427 = vmul.f32 1.0, %v1426
        %v1428 = vsub.f32 8.0, %v1290
        %v1429 = vlaneseq
        %v1430 = vshrl.u32 %v1429, 7
        %v1431 = vsub.s32 0, %v1430
        %v1432 = vrot.slane %v1428, %v1431
        %v1433 = vmul.f32 %v1367, %v1432
        %v1434 = vmul.f32 %v1368, %v1432
        %v1435 = vmul.f32 %v1369, %v1432
        %v1436 = vmul.f32 %v1370, %v1432
        %v1437 = vadd.f32 %v930, %v1433
        %v1438 = vadd.f32 %v935, %v1434
        %v1439 = vadd.f32 %v940, %v1435
        %v1440 = vadd.f32 %v945, %v1436
        %v1441 = vmul.f32 %v1394, %v1023
        %v1442 = vmul.f32 %v1401, %v1028
        %v1443 = vmul.f32 %v1408, %v1033
        %v1444 = vmul.f32 %v1415, %v1038
        %v1445 = vadd.f32 %v1437, %v1441
        %v1446 = vadd.f32 %v1438, %v1442
        %v1447 = vadd.f32 %v1439, %v1443
        %v1448 = vadd.f32 %v1440, %v1444
        %v1449 = vmul.f32 %v1394, %v1421
        %v1450 = vmul.f32 %v1401, %v1423
        %v1451 = vmul.f32 %v1408, %v1425
        %v1452 = vmul.f32 %v1415, %v1427
        %v1453 = vmul.f32 %v1449, %v1449
        %v1454 = vmul.f32 %v1450, %v1450
        %v1455 = vmul.f32 %v1451, %v1451
        %v1456 = vmul.f32 %v1452, %v1452
        %v1457 = vmul.f32 %v1367, 2.0
        %v1458 = vmul.f32 %v1368, 2.0
        %v1459 = vmul.f32 %v1369, 2.0
        %v1460 = vmul.f32 %v1370, 2.0
        %v1461 = vmul.f32 %v1457, %v1116
        %v1462 = vmul.f32 %v1458, %v1121
        %v1463 = vmul.f32 %v1459, %v1126
        %v1464 = vmul.f32 %v1460, %v1131
        %v1465 = vsub.f32 %v1205, %v1461
        %v1466 = vsub.f32 %v1210, %v1462
        %v1467 = vsub.f32 %v1215, %v1463
        %v1468 = vsub.f32 %v1220, %v1464
        %v1469 = vmul.f32 %v1367, %v1367
        %v1470 = vmul.f32 %v1368, %v1368
        %v1471 = vmul.f32 %v1369, %v1369
        %v1472 = vmul.f32 %v1370, %v1370
        %v1473 = vlaneseq
        %v1474 = vshrl.u32 %v1473, 7
        %v1475 = vsub.s32 0, %v1474
        %v1476 = vrot.slane %v1360, %v1475
        %v1477 = vmul.f32 %v1469, %v1476
        %v1478 = vmul.f32 %v1470, %v1476
        %v1479 = vmul.f32 %v1471, %v1476
        %v1480 = vmul.f32 %v1472, %v1476
        %v1481 = vadd.f32 %v1465, %v1477
        %v1482 = vadd.f32 %v1466, %v1478
        %v1483 = vadd.f32 %v1467, %v1479
        %v1484 = vadd.f32 %v1468, %v1480
        %v1485 = vmul.f32 %v1365, %v1366
        %v1486 = vmul.f32 %v1485, 0.5
        %v1487 = vsel %vm563, %v1453, 0.0
        %v1488 = vsel %vm563, %v1454, 0.0
        %v1489 = vadd.f32 %v1487, %v1488
        %v1490 = vsel %vm563, %v1455, 0.0
        %v1491 = vadd.f32 %v1489, %v1490
        %v1492 = vsel %vm563, %v1456, 0.0
        %v1493 = vadd.f32 %v1491, %v1492
        %v1494 = vrot.slane %v1493, 4
        %v1495 = vadd.f32 %v1493, %v1494
        %v1496 = vrot.slane %v1495, 2
        %v1497 = vadd.f32 %v1495, %v1496
        %v1498 = vrot.slane %v1497, 1
        %v1499 = vadd.f32 %v1497, %v1498
        %v1500 = vrcp.pop 32.0
        %v1501 = vmul.f32 %v1499, %v1500
        %v1502 = vmul.f32 %v1486, %v1501
        %v1503 = vmul.f32 %v1421, %v1421
        %v1504 = vmul.f32 %v1423, %v1423
        %v1505 = vmul.f32 %v1425, %v1425
        %v1506 = vmul.f32 %v1427, %v1427
        %v1507 = vmul.f32 %v1481, %v1503
        %v1508 = vmul.f32 %v1482, %v1504
        %v1509 = vmul.f32 %v1483, %v1505
        %v1510 = vmul.f32 %v1484, %v1506
        %v1511 = vsel %vm563, %v1507, 0.0
        %v1512 = vsel %vm563, %v1508, 0.0
        %v1513 = vadd.f32 %v1511, %v1512
        %v1514 = vsel %vm563, %v1509, 0.0
        %v1515 = vadd.f32 %v1513, %v1514
        %v1516 = vsel %vm563, %v1510, 0.0
        %v1517 = vadd.f32 %v1515, %v1516
        %v1518 = vrot.slane %v1517, 4
        %v1519 = vadd.f32 %v1517, %v1518
        %v1520 = vrot.slane %v1519, 2
        %v1521 = vadd.f32 %v1519, %v1520
        %v1522 = vrot.slane %v1521, 1
        %v1523 = vadd.f32 %v1521, %v1522
        %v1524 = vmul.f32 %v1523, %v1500
        %v1525 = vadd.f32 %v1502, %v1524
        %1526 = vst.msk [vmem:[%s432] sm:$0xff] %vm563, %v752
        %1527 = vst.msk [vmem:[%s432 + $0x8] sm:$0xff] %vm563, %v757
        %1528 = vst.msk [vmem:[%s432 + $0x10] sm:$0xff] %vm563, %v762
        %1529 = vst.msk [vmem:[%s432 + $0x18] sm:$0xff] %vm563, %v767
        %1530 = vst.msk [vmem:[%s432 + $0x20] sm:$0xff] %vm563, %v1445
        %1531 = vst.msk [vmem:[%s432 + $0x28] sm:$0xff] %vm563, %v1446
        %1532 = vst.msk [vmem:[%s432 + $0x30] sm:$0xff] %vm563, %v1447
        %1533 = vst.msk [vmem:[%s432 + $0x38] sm:$0xff] %vm563, %v1448
        %1534 = vst.msk [vmem:[%s432 + $0x40] sm:$0xff] %vm563, %v930
        %1535 = vst.msk [vmem:[%s432 + $0x48] sm:$0xff] %vm563, %v935
        %1536 = vst.msk [vmem:[%s432 + $0x50] sm:$0xff] %vm563, %v940
        %1537 = vst.msk [vmem:[%s432 + $0x58] sm:$0xff] %vm563, %v945
        %vm1538 = vcmask 122880
        %1539 = vst.msk [vmem:[%s432 + $0x60] sm:$0x1] %vm1538, %v1525
        %1540 = vst [vmem:[%s414] sm:$0x1] %v667
        %p1541 = scmp.lt.s32.totalorder %s28, 1
        %s1542 = scalar_select %p1541, %s28, 1
        %s1543 = smul.addr %s1542, 13
        %s1544 = smul.addr %s1543, 8
        %s1545 = scalar_lea.vmem %s10, %s1544
        %s1546 = sand.u32 %s287, 1
        %s1547 = scalar_lea.sflag [#allocation4], %s1546
        %s1548 = sand.u32 %s287, 1
        %s1549 = scalar_lea.vmem [#allocation3], %s1548
        // Predicated region
        $region61: #{tpu_custom_call.1} parent=59 // pred_check
          %p1550 = pneg %p271
        $region62: #{tpu_custom_call.1} parent=59 // pred_check_branch
          %1552 = sbr.rel (%p1550) target = $region64
        $region63: #{tpu_custom_call.1} parent=59 // pred_region
          _
        $region64: #{tpu_custom_call.1} parent=59 // pred_fallthru
          _
        // Predicated region
        $region65: #{tpu_custom_call.1} parent=59 // pred_check
          %p1553 = pneg %p297
        $region66: #{tpu_custom_call.1} parent=59 // pred_check_branch
          %1555 = sbr.rel (%p1553) target = $region68
        $region67: #{tpu_custom_call.1} parent=59 // pred_region
          %s1557 = ssub.s32 16, 16
          %1558 = vsyncadd %s1547, %s1557
          %s1559 = smul.addr %s28, 16
          %s1560 = scalar_lea.hbm %s11, %s1559
          %s1562 = sshll.u32 %s1549, 4
          %s1563 = int_to_ptr.vmem [resolvable:$true] %s1562
          %1565 = dma.vmem_to_hbm [thread:$0]  %s1563, 16, %s1560, %s1547
        $region68: #{tpu_custom_call.1} parent=59 // pred_fallthru
          _
      $region60: #{tpu_custom_call.1} parent=5 // pred_fallthru
        _
      %p1566 = scmp.le.s32.totalorder 2, %s23
      // Predicated region
      $region69: #{tpu_custom_call.1} parent=5 // pred_check
        %p1567 = pneg %p1566
      $region70: #{tpu_custom_call.1} parent=5 // pred_check_branch
        %1569 = sbr.rel (%p1567) target = $region72
      $region71: #{tpu_custom_call.1} parent=5 // pred_region
        %s1570 = ssub.s32 %s23, 2
        // Predicated region
        $region73: #{tpu_custom_call.1} parent=71 // pred_check
          %p1571 = pneg %p277
        $region74: #{tpu_custom_call.1} parent=71 // pred_check_branch
          %1573 = sbr.rel (%p1571) target = $region76
        $region75: #{tpu_custom_call.1} parent=71 // pred_region
          %p1574 = scmp.lt.s32.totalorder %s29, 1
          %s1575 = scalar_select %p1574, %s29, 1
          %s1576 = smul.addr %s1575, 13
          %s1577 = smul.addr %s1576, 8
          %s1578 = scalar_lea.vmem %s10, %s1577
        $region76: #{tpu_custom_call.1} parent=71 // pred_fallthru
          _
        // Predicated region
        $region77: #{tpu_custom_call.1} parent=71 // pred_check
          %p1579 = pneg %p303
        $region78: #{tpu_custom_call.1} parent=71 // pred_check_branch
          %1581 = sbr.rel (%p1579) target = $region80
        $region79: #{tpu_custom_call.1} parent=71 // pred_region
          %s1582 = sand.u32 %s288, 1
          %s1583 = scalar_lea.sflag [#allocation4], %s1582
          %s1584 = sand.u32 %s288, 1
          %s1585 = scalar_lea.vmem [#allocation3], %s1584
          %1586 = dma.done %s1583, 16
        $region80: #{tpu_custom_call.1} parent=71 // pred_fallthru
          _
      $region72: #{tpu_custom_call.1} parent=5 // pred_fallthru
        _
    $region6: #{tpu_custom_call.1} parent=1 // loop_footer
      %s27 = sadd.s32 1, %s23
    $region7: #{tpu_custom_call.1} parent=1 // loop_footer_branch
      %22 = sbr.rel target = $region3
    $region8: #{tpu_custom_call.1} parent=1 // loop_exit
      _
    %1587 = vsyncpa [#allocation4], 1
    %s1588 = scalar_lea.sflag [#allocation4], 1
    %1589 = vsyncpa %s1588, 1

</llo_original>
